<compile_context>
chip_gen: v7x
topology: tpu7x:2x2x1
jax: 0.10.0
libtpu: 0.0.40
codegen_flags: <defaults>
</compile_context>

<pallas_src>
import math
from functools import partial

import jax
import jax.numpy as jnp
from jax.experimental import pallas as pl
from jax.experimental.pallas import tpu as pltpu

_INV_SQRT2 = 1.0 / math.sqrt(2.0)


def _layernorm(z, gamma, beta, eps):
    # single-pass LN: var = E[z^2] - mu^2 (halves the lane-reduction traffic)
    mu = jnp.mean(z, axis=-1, keepdims=True)
    ms = jnp.mean(z * z, axis=-1, keepdims=True)
    var = ms - mu * mu
    return (z - mu) * jax.lax.rsqrt(var + eps) * gamma + beta


def respost_block_kernel(x_ref, w_qkv_ref, w_proj_ref, b_proj_ref,
                         g1_ref, beta1_ref,
                         w_fc1_ref, b_fc1_ref, w_fc2_ref, b_fc2_ref,
                         g2_ref, beta2_ref,
                         out_ref, *, num_heads, eps):
    Bblk, N, C = x_ref.shape
    dh = C // num_heads

    x = x_ref[...]                                   # (Bblk, N, C)
    x_f32 = x.astype(jnp.float32)
    x_bf = x.astype(jnp.bfloat16)

    # ---------------- Attention (qkv_bias=False, no qk-norm, no dropout) -----
    # attention scale is already folded into the Q third of w_qkv (wrapper).
    qkv = jnp.dot(x_bf.reshape(Bblk * N, C), w_qkv_ref[...],
                  preferred_element_type=jnp.float32)          # (Bblk*N, 3C) f32
    qkv = qkv.reshape(Bblk, N, 3 * C)

    attn = jnp.zeros((Bblk * N, C), jnp.float32)     # projected-head accumulator
    for h in range(num_heads):                       # static unrolled (small H)
        q = qkv[:, :, h * dh:(h + 1) * dh].astype(jnp.bfloat16)            # (Bblk,N,dh)
        k = qkv[:, :, C + h * dh:C + (h + 1) * dh].astype(jnp.bfloat16)
        v = qkv[:, :, 2 * C + h * dh:2 * C + (h + 1) * dh].astype(jnp.bfloat16)

        # contract the last dims directly: no explicit transpose of k
        s = jnp.einsum('bqd,bkd->bqk', q, k,
                       preferred_element_type=jnp.float32)                 # (Bblk,N,N)
        s = s - jnp.max(s, axis=-1, keepdims=True)
        p = jnp.exp(s)
        p = p * pl.reciprocal(jnp.sum(p, axis=-1, keepdims=True), approx=True)

        o = jnp.einsum('bqk,bkd->bqd', p.astype(jnp.bfloat16), v,
                       preferred_element_type=jnp.float32)                 # (Bblk,N,dh)

        # accumulate this head straight through the output projection
        attn = attn + jnp.dot(o.reshape(Bblk * N, dh).astype(jnp.bfloat16),
                              w_proj_ref[h * dh:(h + 1) * dh, :],
                              preferred_element_type=jnp.float32)
    attn = attn + b_proj_ref[...]                                          # (Bblk*N, C)

    # ---------------- norm1 + residual ---------------------------------------
    x1 = x_f32.reshape(Bblk * N, C) + _layernorm(attn, g1_ref[...], beta1_ref[...], eps)

    # ---------------- MLP: fc1 -> exact GELU -> fc2 ---------------------------
    h1 = jnp.dot(x1.astype(jnp.bfloat16), w_fc1_ref[...],
                 preferred_element_type=jnp.float32) + b_fc1_ref[...]
    h1 = 0.5 * h1 * (1.0 + jax.lax.erf(h1 * _INV_SQRT2))   # torch nn.GELU (erf form)
    h2 = jnp.dot(h1.astype(jnp.bfloat16), w_fc2_ref[...],
                 preferred_element_type=jnp.float32) + b_fc2_ref[...]

    # ---------------- norm2 + residual ----------------------------------------
    x2 = x1 + _layernorm(h2, g2_ref[...], beta2_ref[...], eps)

    out_ref[...] = x2.reshape(Bblk, N, C).astype(out_ref.dtype)


def _pick_block_b(B, N, C, hidden, num_heads):
    """Largest divisor of B that keeps >=2 grid steps (when B >= 2, so both v7x
    TensorCores get work) and a modest per-step f32 activation footprint."""
    if B <= 1:
        return 1
    budget = 8 * 1024 * 1024                       # ~8 MiB of f32 intermediates / step
    for d in range(B // 2, 0, -1):
        if B % d == 0:
            # qkv + one head's scores + mlp hidden + residual/out activations
            per_step = d * (N * (3 * C + hidden + 6 * C) + 2 * N * N) * 4
            if per_step <= budget:
                return d
    return 1


def respost_block(x, params, num_heads, eps=1e-5, block_b=None):
    B, N, C = x.shape
    hidden = params["w_fc1"].shape[1]
    scale = (C // num_heads) ** -0.5

    if block_b is None:
        block_b = _pick_block_b(B, N, C, hidden, num_heads)
    assert B % block_b == 0

    # bf16 MXU operands (f32 accumulation happens in-kernel); fold the attention
    # scale into the Q third of the qkv weight before casting.
    w_qkv = params["w_qkv"].astype(jnp.float32).at[:, :C].multiply(scale).astype(jnp.bfloat16)
    w_proj = params["w_proj"].astype(jnp.bfloat16)
    w_fc1 = params["w_fc1"].astype(jnp.bfloat16)
    w_fc2 = params["w_fc2"].astype(jnp.bfloat16)

    b_proj = params["b_proj"].astype(jnp.float32)
    g1 = params["g1"].astype(jnp.float32)
    beta1 = params["beta1"].astype(jnp.float32)
    b_fc1 = params["b_fc1"].astype(jnp.float32)
    b_fc2 = params["b_fc2"].astype(jnp.float32)
    g2 = params["g2"].astype(jnp.float32)
    beta2 = params["beta2"].astype(jnp.float32)

    kernel = partial(respost_block_kernel, num_heads=num_heads, eps=eps)

    def rep(shape):
        # Parameter is replicated across the batch grid (always block (0,...,0)),
        # so Pallas only DMAs it on the first grid step.
        return pl.BlockSpec(shape, lambda b, _n=len(shape): (0,) * _n)

    in_specs = [
        pl.BlockSpec((block_b, N, C), lambda b: (b, 0, 0)),   # x
        rep((C, 3 * C)),                                      # w_qkv (bf16, Q pre-scaled)
        rep((C, C)),                                          # w_proj (bf16)
        rep((1, C)),                                          # b_proj
        rep((1, C)),                                          # ln1 gamma
        rep((1, C)),                                          # ln1 beta
        rep((C, hidden)),                                     # w_fc1 (bf16)
        rep((1, hidden)),                                     # b_fc1
        rep((hidden, C)),                                     # w_fc2 (bf16)
        rep((1, C)),                                          # b_fc2
        rep((1, C)),                                          # ln2 gamma
        rep((1, C)),                                          # ln2 beta
    ]

    # Explicit VMEM budget: (double-buffered) weights + x/out blocks + headroom,
    # clamped to v7x's 64 MiB physical VMEM.
    weight_bytes = sum(int(a.size) * a.dtype.itemsize for a in (w_qkv, w_proj, w_fc1, w_fc2))
    block_bytes = block_b * N * C * x.dtype.itemsize
    est = 2 * weight_bytes + 4 * block_bytes + 8 * (1 << 20)
    vmem_limit = int(min(max(est, 32 * (1 << 20)), 64 * (1 << 20)))

    return pl.pallas_call(
        kernel,
        out_shape=jax.ShapeDtypeStruct((B, N, C), x.dtype),
        grid_spec=pltpu.PrefetchScalarGridSpec(
            num_scalar_prefetch=0,
            grid=(B // block_b,),
            in_specs=in_specs,
            out_specs=pl.BlockSpec((block_b, N, C), lambda b: (b, 0, 0)),
        ),
        compiler_params=pltpu.CompilerParams(
            dimension_semantics=("parallel",),
            vmem_limit_bytes=vmem_limit,
        ),
    )(x,
      w_qkv, w_proj, b_proj,
      g1, beta1,
      w_fc1, b_fc1, w_fc2, b_fc2,
      g2, beta2)


# ----------------------------- pure-JAX (f32) reference ----------------------
def respost_block_ref(x, params, num_heads, eps=1e-5):
    B, N, C = x.shape
    dh = C // num_heads

    qkv = (x @ params["w_qkv"]).reshape(B, N, 3, num_heads, dh).transpose(2, 0, 3, 1, 4)
    q, k, v = qkv[0], qkv[1], qkv[2]                     # (B, H, N, dh)
    s = jnp.einsum("bhqd,bhkd->bhqk", q, k) * (dh ** -0.5)
    p = jax.nn.softmax(s, axis=-1)
    o = jnp.einsum("bhqk,bhkd->bhqd", p, v).transpose(0, 2, 1, 3).reshape(B, N, C)
    o = o @ params["w_proj"] + params["b_proj"][0]

    def ln(z, g, b):
        mu = z.mean(-1, keepdims=True)
        var = ((z - mu) ** 2).mean(-1, keepdims=True)
        return (z - mu) * jax.lax.rsqrt(var + eps) * g[0] + b[0]

    x = x + ln(o, params["g1"], params["beta1"])
    h = x @ params["w_fc1"] + params["b_fc1"][0]
    h = 0.5 * h * (1.0 + jax.lax.erf(h * _INV_SQRT2))
    h = h @ params["w_fc2"] + params["b_fc2"][0]
    x = x + ln(h, params["g2"], params["beta2"])
    return x


if __name__ == "__main__":
    # Small shapes consistent with the module: B=2, seq N=8, dim C=32,
    # num_heads=4 (head_dim=8), mlp_ratio=4 -> hidden=128.
    B, N, C, H = 2, 8, 32, 4
    hidden = int(C * 4.0)

    key = jax.random.PRNGKey(0)
    ks = jax.random.split(key, 6)
    std = 0.02
    params = {
        # qkv_bias=False -> no qkv bias. init_values=None -> LN weight=1, bias=0.
        "w_qkv":  (jax.random.normal(ks[0], (C, 3 * C), jnp.float32) * std),
        "w_proj": (jax.random.normal(ks[1], (C, C), jnp.float32) * std),
        "b_proj": jnp.zeros((1, C), jnp.float32),
        "g1":     jnp.ones((1, C), jnp.float32),
        "beta1":  jnp.zeros((1, C), jnp.float32),
        "w_fc1":  (jax.random.normal(ks[2], (C, hidden), jnp.float32) * std),
        "b_fc1":  jnp.zeros((1, hidden), jnp.float32),
        "w_fc2":  (jax.random.normal(ks[3], (hidden, C), jnp.float32) * std),
        "b_fc2":  jnp.zeros((1, C), jnp.float32),
        "g2":     jnp.ones((1, C), jnp.float32),
        "beta2":  jnp.zeros((1, C), jnp.float32),
    }

    x = jax.random.normal(ks[4], (B, N, C), jnp.float32)

    out = jax.block_until_ready(respost_block(x, params, num_heads=H))
    ref = respost_block_ref(x, params, num_heads=H)

    assert out.shape == (B, N, C)
    # bf16 MXU operands (with f32 accumulation) loosen elementwise agreement vs
    # the pure-f32 reference (the LayerNorms re-amplify small bf16 rounding), so
    # check a relative Frobenius error plus a max-abs bound.
    rel = jnp.linalg.norm(out - ref) / jnp.linalg.norm(ref)
    max_abs = jnp.max(jnp.abs(out - ref))
    assert rel < 3e-2, f"relative error too large: {rel}"
    assert max_abs < 2e-1, f"max abs error too large: {max_abs}"

    print("KERNEL_OK")
</pallas_src>

<mosaic_0001>
module attributes {stable_mosaic.version = 11 : i64} {
  func.func @respost_block_kernel(%arg0: i32, %arg1: memref<1x8x32xf32, #tpu.memory_space<vmem>>, %arg2: memref<32x96xbf16, #tpu.memory_space<vmem>>, %arg3: memref<32x32xbf16, #tpu.memory_space<vmem>>, %arg4: memref<1x32xf32, #tpu.memory_space<vmem>>, %arg5: memref<1x32xf32, #tpu.memory_space<vmem>>, %arg6: memref<1x32xf32, #tpu.memory_space<vmem>>, %arg7: memref<32x128xbf16, #tpu.memory_space<vmem>>, %arg8: memref<1x128xf32, #tpu.memory_space<vmem>>, %arg9: memref<128x32xbf16, #tpu.memory_space<vmem>>, %arg10: memref<1x32xf32, #tpu.memory_space<vmem>>, %arg11: memref<1x32xf32, #tpu.memory_space<vmem>>, %arg12: memref<1x32xf32, #tpu.memory_space<vmem>>, %arg13: memref<1x8x32xf32, #tpu.memory_space<vmem>>) attributes {dimension_semantics = [#tpu.dimension_semantics<parallel>], iteration_bounds = array<i64: 2>, scalar_prefetch = 0 : i64, scratch_operands = 0 : i64, tpu.core_type = #tpu.core_type<tc>, window_params = [{transform_indices = @transform_0, window_bounds = array<i64: 1, 8, 32>}, {pipeline_mode = #tpu.pipeline_mode<synchronous>, transform_indices = @transform_1, window_bounds = array<i64: 32, 96>}, {pipeline_mode = #tpu.pipeline_mode<synchronous>, transform_indices = @transform_2, window_bounds = array<i64: 32, 32>}, {pipeline_mode = #tpu.pipeline_mode<synchronous>, transform_indices = @transform_3, window_bounds = array<i64: 1, 32>}, {pipeline_mode = #tpu.pipeline_mode<synchronous>, transform_indices = @transform_4, window_bounds = array<i64: 1, 32>}, {pipeline_mode = #tpu.pipeline_mode<synchronous>, transform_indices = @transform_5, window_bounds = array<i64: 1, 32>}, {pipeline_mode = #tpu.pipeline_mode<synchronous>, transform_indices = @transform_6, window_bounds = array<i64: 32, 128>}, {pipeline_mode = #tpu.pipeline_mode<synchronous>, transform_indices = @transform_7, window_bounds = array<i64: 1, 128>}, {pipeline_mode = #tpu.pipeline_mode<synchronous>, transform_indices = @transform_8, window_bounds = array<i64: 128, 32>}, {pipeline_mode = #tpu.pipeline_mode<synchronous>, transform_indices = @transform_9, window_bounds = array<i64: 1, 32>}, {pipeline_mode = #tpu.pipeline_mode<synchronous>, transform_indices = @transform_10, window_bounds = array<i64: 1, 32>}, {pipeline_mode = #tpu.pipeline_mode<synchronous>, transform_indices = @transform_11, window_bounds = array<i64: 1, 32>}, {transform_indices = @transform_12, window_bounds = array<i64: 1, 8, 32>}]} {
    %c0 = arith.constant 0 : index
    %c0_0 = arith.constant 0 : index
    %c0_1 = arith.constant 0 : index
    %0 = vector.load %arg1[%c0, %c0_0, %c0_1] : memref<1x8x32xf32, #tpu.memory_space<vmem>>, vector<1x8x32xf32>
    %1 = arith.truncf %0 : vector<1x8x32xf32> to vector<1x8x32xbf16>
    %2 = vector.shape_cast %1 : vector<1x8x32xbf16> to vector<8x32xbf16>
    %c0_2 = arith.constant 0 : index
    %c0_3 = arith.constant 0 : index
    %3 = vector.load %arg2[%c0_2, %c0_3] : memref<32x96xbf16, #tpu.memory_space<vmem>>, vector<32x96xbf16>
    %cst = arith.constant dense<0.000000e+00> : vector<8x96xf32>
    %4 = tpu.matmul %2, %3, %cst {dimension_numbers = #tpu.dot_dimension_numbers<[1], [0], [0], [1], [0, 0, 1, 1], [], []>} : vector<8x32xbf16>, vector<32x96xbf16>, vector<8x96xf32> -> vector<8x96xf32>
    %5 = vector.shape_cast %4 : vector<8x96xf32> to vector<1x8x96xf32>
    %cst_4 = arith.constant 0.000000e+00 : f32
    %6 = vector.broadcast %cst_4 : f32 to vector<8x32xf32>
    %7 = vector.extract_strided_slice %5 {offsets = [0, 0, 0], sizes = [1, 8, 8], strides = [1, 1, 1]} : vector<1x8x96xf32> to vector<1x8x8xf32>
    %8 = arith.truncf %7 : vector<1x8x8xf32> to vector<1x8x8xbf16>
    %9 = vector.extract_strided_slice %5 {offsets = [0, 0, 32], sizes = [1, 8, 8], strides = [1, 1, 1]} : vector<1x8x96xf32> to vector<1x8x8xf32>
    %10 = arith.truncf %9 : vector<1x8x8xf32> to vector<1x8x8xbf16>
    %11 = vector.extract_strided_slice %5 {offsets = [0, 0, 64], sizes = [1, 8, 8], strides = [1, 1, 1]} : vector<1x8x96xf32> to vector<1x8x8xf32>
    %12 = arith.truncf %11 : vector<1x8x8xf32> to vector<1x8x8xbf16>
    "tpu.trace_start"() <{level = 10 : i32, message = "bqd,bkd->bqk"}> : () -> ()
    %cst_5 = arith.constant dense<0.000000e+00> : vector<1x8x8xf32>
    %13 = tpu.matmul %8, %10, %cst_5 {dimension_numbers = #tpu.dot_dimension_numbers<[2], [2], [1], [1], [0, 0, 0, 1, 1, 1], [0], [0]>} : vector<1x8x8xbf16>, vector<1x8x8xbf16>, vector<1x8x8xf32> -> vector<1x8x8xf32>
    "tpu.trace_stop"() : () -> ()
    %cst_6 = arith.constant dense<0xFF800000> : vector<1x8xf32>
    %14 = vector.multi_reduction <maximumf>, %13, %cst_6 [2] : vector<1x8x8xf32> to vector<1x8xf32>
    %15 = vector.shape_cast %14 : vector<1x8xf32> to vector<1x8x1xf32>
    %16 = vector.broadcast %15 : vector<1x8x1xf32> to vector<1x8x8xf32>
    %17 = arith.subf %13, %16 : vector<1x8x8xf32>
    %18 = math.exp %17 : vector<1x8x8xf32>
    %cst_7 = arith.constant dense<0.000000e+00> : vector<1x8xf32>
    %19 = vector.multi_reduction <add>, %18, %cst_7 [2] : vector<1x8x8xf32> to vector<1x8xf32>
    %20 = vector.shape_cast %19 : vector<1x8xf32> to vector<1x8x1xf32>
    %21 = tpu.reciprocal %20 {approx = true} : vector<1x8x1xf32> -> vector<1x8x1xf32>
    %22 = vector.broadcast %21 : vector<1x8x1xf32> to vector<1x8x8xf32>
    %23 = arith.mulf %18, %22 : vector<1x8x8xf32>
    %24 = arith.truncf %23 : vector<1x8x8xf32> to vector<1x8x8xbf16>
    "tpu.trace_start"() <{level = 10 : i32, message = "bqk,bkd->bqd"}> : () -> ()
    %cst_8 = arith.constant dense<0.000000e+00> : vector<1x8x8xf32>
    %25 = tpu.matmul %24, %12, %cst_8 {dimension_numbers = #tpu.dot_dimension_numbers<[2], [1], [1], [2], [0, 0, 0, 1, 1, 2], [0], [0]>} : vector<1x8x8xbf16>, vector<1x8x8xbf16>, vector<1x8x8xf32> -> vector<1x8x8xf32>
    "tpu.trace_stop"() : () -> ()
    %26 = vector.shape_cast %25 : vector<1x8x8xf32> to vector<8x8xf32>
    %27 = arith.truncf %26 : vector<8x8xf32> to vector<8x8xbf16>
    %c0_9 = arith.constant 0 : index
    %c0_10 = arith.constant 0 : index
    %28 = vector.load %arg3[%c0_9, %c0_10] : memref<32x32xbf16, #tpu.memory_space<vmem>>, vector<8x32xbf16>
    %cst_11 = arith.constant dense<0.000000e+00> : vector<8x32xf32>
    %29 = tpu.matmul %27, %28, %cst_11 {dimension_numbers = #tpu.dot_dimension_numbers<[1], [0], [0], [1], [0, 0, 1, 1], [], []>} : vector<8x8xbf16>, vector<8x32xbf16>, vector<8x32xf32> -> vector<8x32xf32>
    %30 = arith.addf %6, %29 : vector<8x32xf32>
    %31 = vector.extract_strided_slice %5 {offsets = [0, 0, 8], sizes = [1, 8, 8], strides = [1, 1, 1]} : vector<1x8x96xf32> to vector<1x8x8xf32>
    %32 = arith.truncf %31 : vector<1x8x8xf32> to vector<1x8x8xbf16>
    %33 = vector.extract_strided_slice %5 {offsets = [0, 0, 40], sizes = [1, 8, 8], strides = [1, 1, 1]} : vector<1x8x96xf32> to vector<1x8x8xf32>
    %34 = arith.truncf %33 : vector<1x8x8xf32> to vector<1x8x8xbf16>
    %35 = vector.extract_strided_slice %5 {offsets = [0, 0, 72], sizes = [1, 8, 8], strides = [1, 1, 1]} : vector<1x8x96xf32> to vector<1x8x8xf32>
    %36 = arith.truncf %35 : vector<1x8x8xf32> to vector<1x8x8xbf16>
    "tpu.trace_start"() <{level = 10 : i32, message = "bqd,bkd->bqk"}> : () -> ()
    %cst_12 = arith.constant dense<0.000000e+00> : vector<1x8x8xf32>
    %37 = tpu.matmul %32, %34, %cst_12 {dimension_numbers = #tpu.dot_dimension_numbers<[2], [2], [1], [1], [0, 0, 0, 1, 1, 1], [0], [0]>} : vector<1x8x8xbf16>, vector<1x8x8xbf16>, vector<1x8x8xf32> -> vector<1x8x8xf32>
    "tpu.trace_stop"() : () -> ()
    %cst_13 = arith.constant dense<0xFF800000> : vector<1x8xf32>
    %38 = vector.multi_reduction <maximumf>, %37, %cst_13 [2] : vector<1x8x8xf32> to vector<1x8xf32>
    %39 = vector.shape_cast %38 : vector<1x8xf32> to vector<1x8x1xf32>
    %40 = vector.broadcast %39 : vector<1x8x1xf32> to vector<1x8x8xf32>
    %41 = arith.subf %37, %40 : vector<1x8x8xf32>
    %42 = math.exp %41 : vector<1x8x8xf32>
    %cst_14 = arith.constant dense<0.000000e+00> : vector<1x8xf32>
    %43 = vector.multi_reduction <add>, %42, %cst_14 [2] : vector<1x8x8xf32> to vector<1x8xf32>
    %44 = vector.shape_cast %43 : vector<1x8xf32> to vector<1x8x1xf32>
    %45 = tpu.reciprocal %44 {approx = true} : vector<1x8x1xf32> -> vector<1x8x1xf32>
    %46 = vector.broadcast %45 : vector<1x8x1xf32> to vector<1x8x8xf32>
    %47 = arith.mulf %42, %46 : vector<1x8x8xf32>
    %48 = arith.truncf %47 : vector<1x8x8xf32> to vector<1x8x8xbf16>
    "tpu.trace_start"() <{level = 10 : i32, message = "bqk,bkd->bqd"}> : () -> ()
    %cst_15 = arith.constant dense<0.000000e+00> : vector<1x8x8xf32>
    %49 = tpu.matmul %48, %36, %cst_15 {dimension_numbers = #tpu.dot_dimension_numbers<[2], [1], [1], [2], [0, 0, 0, 1, 1, 2], [0], [0]>} : vector<1x8x8xbf16>, vector<1x8x8xbf16>, vector<1x8x8xf32> -> vector<1x8x8xf32>
    "tpu.trace_stop"() : () -> ()
    %50 = vector.shape_cast %49 : vector<1x8x8xf32> to vector<8x8xf32>
    %51 = arith.truncf %50 : vector<8x8xf32> to vector<8x8xbf16>
    %c8 = arith.constant 8 : index
    %c0_16 = arith.constant 0 : index
    %52 = vector.load %arg3[%c8, %c0_16] : memref<32x32xbf16, #tpu.memory_space<vmem>>, vector<8x32xbf16>
    %cst_17 = arith.constant dense<0.000000e+00> : vector<8x32xf32>
    %53 = tpu.matmul %51, %52, %cst_17 {dimension_numbers = #tpu.dot_dimension_numbers<[1], [0], [0], [1], [0, 0, 1, 1], [], []>} : vector<8x8xbf16>, vector<8x32xbf16>, vector<8x32xf32> -> vector<8x32xf32>
    %54 = arith.addf %30, %53 : vector<8x32xf32>
    %55 = vector.extract_strided_slice %5 {offsets = [0, 0, 16], sizes = [1, 8, 8], strides = [1, 1, 1]} : vector<1x8x96xf32> to vector<1x8x8xf32>
    %56 = arith.truncf %55 : vector<1x8x8xf32> to vector<1x8x8xbf16>
    %57 = vector.extract_strided_slice %5 {offsets = [0, 0, 48], sizes = [1, 8, 8], strides = [1, 1, 1]} : vector<1x8x96xf32> to vector<1x8x8xf32>
    %58 = arith.truncf %57 : vector<1x8x8xf32> to vector<1x8x8xbf16>
    %59 = vector.extract_strided_slice %5 {offsets = [0, 0, 80], sizes = [1, 8, 8], strides = [1, 1, 1]} : vector<1x8x96xf32> to vector<1x8x8xf32>
    %60 = arith.truncf %59 : vector<1x8x8xf32> to vector<1x8x8xbf16>
    "tpu.trace_start"() <{level = 10 : i32, message = "bqd,bkd->bqk"}> : () -> ()
    %cst_18 = arith.constant dense<0.000000e+00> : vector<1x8x8xf32>
    %61 = tpu.matmul %56, %58, %cst_18 {dimension_numbers = #tpu.dot_dimension_numbers<[2], [2], [1], [1], [0, 0, 0, 1, 1, 1], [0], [0]>} : vector<1x8x8xbf16>, vector<1x8x8xbf16>, vector<1x8x8xf32> -> vector<1x8x8xf32>
    "tpu.trace_stop"() : () -> ()
    %cst_19 = arith.constant dense<0xFF800000> : vector<1x8xf32>
    %62 = vector.multi_reduction <maximumf>, %61, %cst_19 [2] : vector<1x8x8xf32> to vector<1x8xf32>
    %63 = vector.shape_cast %62 : vector<1x8xf32> to vector<1x8x1xf32>
    %64 = vector.broadcast %63 : vector<1x8x1xf32> to vector<1x8x8xf32>
    %65 = arith.subf %61, %64 : vector<1x8x8xf32>
    %66 = math.exp %65 : vector<1x8x8xf32>
    %cst_20 = arith.constant dense<0.000000e+00> : vector<1x8xf32>
    %67 = vector.multi_reduction <add>, %66, %cst_20 [2] : vector<1x8x8xf32> to vector<1x8xf32>
    %68 = vector.shape_cast %67 : vector<1x8xf32> to vector<1x8x1xf32>
    %69 = tpu.reciprocal %68 {approx = true} : vector<1x8x1xf32> -> vector<1x8x1xf32>
    %70 = vector.broadcast %69 : vector<1x8x1xf32> to vector<1x8x8xf32>
    %71 = arith.mulf %66, %70 : vector<1x8x8xf32>
    %72 = arith.truncf %71 : vector<1x8x8xf32> to vector<1x8x8xbf16>
    "tpu.trace_start"() <{level = 10 : i32, message = "bqk,bkd->bqd"}> : () -> ()
    %cst_21 = arith.constant dense<0.000000e+00> : vector<1x8x8xf32>
    %73 = tpu.matmul %72, %60, %cst_21 {dimension_numbers = #tpu.dot_dimension_numbers<[2], [1], [1], [2], [0, 0, 0, 1, 1, 2], [0], [0]>} : vector<1x8x8xbf16>, vector<1x8x8xbf16>, vector<1x8x8xf32> -> vector<1x8x8xf32>
    "tpu.trace_stop"() : () -> ()
    %74 = vector.shape_cast %73 : vector<1x8x8xf32> to vector<8x8xf32>
    %75 = arith.truncf %74 : vector<8x8xf32> to vector<8x8xbf16>
    %c16 = arith.constant 16 : index
    %c0_22 = arith.constant 0 : index
    %76 = vector.load %arg3[%c16, %c0_22] : memref<32x32xbf16, #tpu.memory_space<vmem>>, vector<8x32xbf16>
    %cst_23 = arith.constant dense<0.000000e+00> : vector<8x32xf32>
    %77 = tpu.matmul %75, %76, %cst_23 {dimension_numbers = #tpu.dot_dimension_numbers<[1], [0], [0], [1], [0, 0, 1, 1], [], []>} : vector<8x8xbf16>, vector<8x32xbf16>, vector<8x32xf32> -> vector<8x32xf32>
    %78 = arith.addf %54, %77 : vector<8x32xf32>
    %79 = vector.extract_strided_slice %5 {offsets = [0, 0, 24], sizes = [1, 8, 8], strides = [1, 1, 1]} : vector<1x8x96xf32> to vector<1x8x8xf32>
    %80 = arith.truncf %79 : vector<1x8x8xf32> to vector<1x8x8xbf16>
    %81 = vector.extract_strided_slice %5 {offsets = [0, 0, 56], sizes = [1, 8, 8], strides = [1, 1, 1]} : vector<1x8x96xf32> to vector<1x8x8xf32>
    %82 = arith.truncf %81 : vector<1x8x8xf32> to vector<1x8x8xbf16>
    %83 = vector.extract_strided_slice %5 {offsets = [0, 0, 88], sizes = [1, 8, 8], strides = [1, 1, 1]} : vector<1x8x96xf32> to vector<1x8x8xf32>
    %84 = arith.truncf %83 : vector<1x8x8xf32> to vector<1x8x8xbf16>
    "tpu.trace_start"() <{level = 10 : i32, message = "bqd,bkd->bqk"}> : () -> ()
    %cst_24 = arith.constant dense<0.000000e+00> : vector<1x8x8xf32>
    %85 = tpu.matmul %80, %82, %cst_24 {dimension_numbers = #tpu.dot_dimension_numbers<[2], [2], [1], [1], [0, 0, 0, 1, 1, 1], [0], [0]>} : vector<1x8x8xbf16>, vector<1x8x8xbf16>, vector<1x8x8xf32> -> vector<1x8x8xf32>
    "tpu.trace_stop"() : () -> ()
    %cst_25 = arith.constant dense<0xFF800000> : vector<1x8xf32>
    %86 = vector.multi_reduction <maximumf>, %85, %cst_25 [2] : vector<1x8x8xf32> to vector<1x8xf32>
    %87 = vector.shape_cast %86 : vector<1x8xf32> to vector<1x8x1xf32>
    %88 = vector.broadcast %87 : vector<1x8x1xf32> to vector<1x8x8xf32>
    %89 = arith.subf %85, %88 : vector<1x8x8xf32>
    %90 = math.exp %89 : vector<1x8x8xf32>
    %cst_26 = arith.constant dense<0.000000e+00> : vector<1x8xf32>
    %91 = vector.multi_reduction <add>, %90, %cst_26 [2] : vector<1x8x8xf32> to vector<1x8xf32>
    %92 = vector.shape_cast %91 : vector<1x8xf32> to vector<1x8x1xf32>
    %93 = tpu.reciprocal %92 {approx = true} : vector<1x8x1xf32> -> vector<1x8x1xf32>
    %94 = vector.broadcast %93 : vector<1x8x1xf32> to vector<1x8x8xf32>
    %95 = arith.mulf %90, %94 : vector<1x8x8xf32>
    %96 = arith.truncf %95 : vector<1x8x8xf32> to vector<1x8x8xbf16>
    "tpu.trace_start"() <{level = 10 : i32, message = "bqk,bkd->bqd"}> : () -> ()
    %cst_27 = arith.constant dense<0.000000e+00> : vector<1x8x8xf32>
    %97 = tpu.matmul %96, %84, %cst_27 {dimension_numbers = #tpu.dot_dimension_numbers<[2], [1], [1], [2], [0, 0, 0, 1, 1, 2], [0], [0]>} : vector<1x8x8xbf16>, vector<1x8x8xbf16>, vector<1x8x8xf32> -> vector<1x8x8xf32>
    "tpu.trace_stop"() : () -> ()
    %98 = vector.shape_cast %97 : vector<1x8x8xf32> to vector<8x8xf32>
    %99 = arith.truncf %98 : vector<8x8xf32> to vector<8x8xbf16>
    %c24 = arith.constant 24 : index
    %c0_28 = arith.constant 0 : index
    %100 = vector.load %arg3[%c24, %c0_28] : memref<32x32xbf16, #tpu.memory_space<vmem>>, vector<8x32xbf16>
    %cst_29 = arith.constant dense<0.000000e+00> : vector<8x32xf32>
    %101 = tpu.matmul %99, %100, %cst_29 {dimension_numbers = #tpu.dot_dimension_numbers<[1], [0], [0], [1], [0, 0, 1, 1], [], []>} : vector<8x8xbf16>, vector<8x32xbf16>, vector<8x32xf32> -> vector<8x32xf32>
    %102 = arith.addf %78, %101 : vector<8x32xf32>
    %c0_30 = arith.constant 0 : index
    %c0_31 = arith.constant 0 : index
    %103 = vector.load %arg4[%c0_30, %c0_31] : memref<1x32xf32, #tpu.memory_space<vmem>>, vector<1x32xf32>
    %104 = vector.broadcast %103 : vector<1x32xf32> to vector<8x32xf32>
    %105 = arith.addf %102, %104 : vector<8x32xf32>
    %106 = vector.shape_cast %0 : vector<1x8x32xf32> to vector<8x32xf32>
    %c0_32 = arith.constant 0 : index
    %c0_33 = arith.constant 0 : index
    %107 = vector.load %arg5[%c0_32, %c0_33] : memref<1x32xf32, #tpu.memory_space<vmem>>, vector<1x32xf32>
    %c0_34 = arith.constant 0 : index
    %c0_35 = arith.constant 0 : index
    %108 = vector.load %arg6[%c0_34, %c0_35] : memref<1x32xf32, #tpu.memory_space<vmem>>, vector<1x32xf32>
    %cst_36 = arith.constant dense<0.000000e+00> : vector<8xf32>
    %109 = vector.multi_reduction <add>, %105, %cst_36 [1] : vector<8x32xf32> to vector<8xf32>
    %110 = vector.shape_cast %109 : vector<8xf32> to vector<8x1xf32>
    %cst_37 = arith.constant 3.200000e+01 : f32
    %111 = vector.broadcast %cst_37 : f32 to vector<8x1xf32>
    %112 = arith.divf %110, %111 : vector<8x1xf32>
    %113 = arith.mulf %105, %105 : vector<8x32xf32>
    %cst_38 = arith.constant dense<0.000000e+00> : vector<8xf32>
    %114 = vector.multi_reduction <add>, %113, %cst_38 [1] : vector<8x32xf32> to vector<8xf32>
    %115 = vector.shape_cast %114 : vector<8xf32> to vector<8x1xf32>
    %cst_39 = arith.constant 3.200000e+01 : f32
    %116 = vector.broadcast %cst_39 : f32 to vector<8x1xf32>
    %117 = arith.divf %115, %116 : vector<8x1xf32>
    %118 = arith.mulf %112, %112 : vector<8x1xf32>
    %119 = arith.subf %117, %118 : vector<8x1xf32>
    %120 = vector.broadcast %112 : vector<8x1xf32> to vector<8x32xf32>
    %121 = arith.subf %105, %120 : vector<8x32xf32>
    %cst_40 = arith.constant 9.99999974E-6 : f32
    %122 = vector.broadcast %cst_40 : f32 to vector<8x1xf32>
    %123 = arith.addf %119, %122 : vector<8x1xf32>
    %124 = math.rsqrt %123 : vector<8x1xf32>
    %125 = vector.broadcast %124 : vector<8x1xf32> to vector<8x32xf32>
    %126 = arith.mulf %121, %125 : vector<8x32xf32>
    %127 = vector.broadcast %107 : vector<1x32xf32> to vector<8x32xf32>
    %128 = arith.mulf %126, %127 : vector<8x32xf32>
    %129 = vector.broadcast %108 : vector<1x32xf32> to vector<8x32xf32>
    %130 = arith.addf %128, %129 : vector<8x32xf32>
    %131 = arith.addf %106, %130 : vector<8x32xf32>
    %132 = arith.truncf %131 : vector<8x32xf32> to vector<8x32xbf16>
    %c0_41 = arith.constant 0 : index
    %c0_42 = arith.constant 0 : index
    %133 = vector.load %arg7[%c0_41, %c0_42] : memref<32x128xbf16, #tpu.memory_space<vmem>>, vector<32x128xbf16>
    %cst_43 = arith.constant dense<0.000000e+00> : vector<8x128xf32>
    %134 = tpu.matmul %132, %133, %cst_43 {dimension_numbers = #tpu.dot_dimension_numbers<[1], [0], [0], [1], [0, 0, 1, 1], [], []>} : vector<8x32xbf16>, vector<32x128xbf16>, vector<8x128xf32> -> vector<8x128xf32>
    %c0_44 = arith.constant 0 : index
    %c0_45 = arith.constant 0 : index
    %135 = vector.load %arg8[%c0_44, %c0_45] : memref<1x128xf32, #tpu.memory_space<vmem>>, vector<1x128xf32>
    %136 = vector.broadcast %135 : vector<1x128xf32> to vector<8x128xf32>
    %137 = arith.addf %134, %136 : vector<8x128xf32>
    %cst_46 = arith.constant 5.000000e-01 : f32
    %138 = vector.broadcast %cst_46 : f32 to vector<8x128xf32>
    %139 = arith.mulf %138, %137 : vector<8x128xf32>
    %cst_47 = arith.constant 0.707106769 : f32
    %140 = vector.broadcast %cst_47 : f32 to vector<8x128xf32>
    %141 = arith.mulf %137, %140 : vector<8x128xf32>
    %142 = math.erf %141 : vector<8x128xf32>
    %cst_48 = arith.constant 1.000000e+00 : f32
    %143 = vector.broadcast %cst_48 : f32 to vector<8x128xf32>
    %144 = arith.addf %143, %142 : vector<8x128xf32>
    %145 = arith.mulf %139, %144 : vector<8x128xf32>
    %146 = arith.truncf %145 : vector<8x128xf32> to vector<8x128xbf16>
    %c0_49 = arith.constant 0 : index
    %c0_50 = arith.constant 0 : index
    %147 = vector.load %arg9[%c0_49, %c0_50] : memref<128x32xbf16, #tpu.memory_space<vmem>>, vector<128x32xbf16>
    %cst_51 = arith.constant dense<0.000000e+00> : vector<8x32xf32>
    %148 = tpu.matmul %146, %147, %cst_51 {dimension_numbers = #tpu.dot_dimension_numbers<[1], [0], [0], [1], [0, 0, 1, 1], [], []>} : vector<8x128xbf16>, vector<128x32xbf16>, vector<8x32xf32> -> vector<8x32xf32>
    %c0_52 = arith.constant 0 : index
    %c0_53 = arith.constant 0 : index
    %149 = vector.load %arg10[%c0_52, %c0_53] : memref<1x32xf32, #tpu.memory_space<vmem>>, vector<1x32xf32>
    %150 = vector.broadcast %149 : vector<1x32xf32> to vector<8x32xf32>
    %151 = arith.addf %148, %150 : vector<8x32xf32>
    %c0_54 = arith.constant 0 : index
    %c0_55 = arith.constant 0 : index
    %152 = vector.load %arg11[%c0_54, %c0_55] : memref<1x32xf32, #tpu.memory_space<vmem>>, vector<1x32xf32>
    %c0_56 = arith.constant 0 : index
    %c0_57 = arith.constant 0 : index
    %153 = vector.load %arg12[%c0_56, %c0_57] : memref<1x32xf32, #tpu.memory_space<vmem>>, vector<1x32xf32>
    %cst_58 = arith.constant dense<0.000000e+00> : vector<8xf32>
    %154 = vector.multi_reduction <add>, %151, %cst_58 [1] : vector<8x32xf32> to vector<8xf32>
    %155 = vector.shape_cast %154 : vector<8xf32> to vector<8x1xf32>
    %cst_59 = arith.constant 3.200000e+01 : f32
    %156 = vector.broadcast %cst_59 : f32 to vector<8x1xf32>
    %157 = arith.divf %155, %156 : vector<8x1xf32>
    %158 = arith.mulf %151, %151 : vector<8x32xf32>
    %cst_60 = arith.constant dense<0.000000e+00> : vector<8xf32>
    %159 = vector.multi_reduction <add>, %158, %cst_60 [1] : vector<8x32xf32> to vector<8xf32>
    %160 = vector.shape_cast %159 : vector<8xf32> to vector<8x1xf32>
    %cst_61 = arith.constant 3.200000e+01 : f32
    %161 = vector.broadcast %cst_61 : f32 to vector<8x1xf32>
    %162 = arith.divf %160, %161 : vector<8x1xf32>
    %163 = arith.mulf %157, %157 : vector<8x1xf32>
    %164 = arith.subf %162, %163 : vector<8x1xf32>
    %165 = vector.broadcast %157 : vector<8x1xf32> to vector<8x32xf32>
    %166 = arith.subf %151, %165 : vector<8x32xf32>
    %cst_62 = arith.constant 9.99999974E-6 : f32
    %167 = vector.broadcast %cst_62 : f32 to vector<8x1xf32>
    %168 = arith.addf %164, %167 : vector<8x1xf32>
    %169 = math.rsqrt %168 : vector<8x1xf32>
    %170 = vector.broadcast %169 : vector<8x1xf32> to vector<8x32xf32>
    %171 = arith.mulf %166, %170 : vector<8x32xf32>
    %172 = vector.broadcast %152 : vector<1x32xf32> to vector<8x32xf32>
    %173 = arith.mulf %171, %172 : vector<8x32xf32>
    %174 = vector.broadcast %153 : vector<1x32xf32> to vector<8x32xf32>
    %175 = arith.addf %173, %174 : vector<8x32xf32>
    %176 = arith.addf %131, %175 : vector<8x32xf32>
    %177 = vector.shape_cast %176 : vector<8x32xf32> to vector<1x8x32xf32>
    %c0_63 = arith.constant 0 : index
    %c0_64 = arith.constant 0 : index
    %c0_65 = arith.constant 0 : index
    %178 = vector.load %arg13[%c0_63, %c0_64, %c0_65] : memref<1x8x32xf32, #tpu.memory_space<vmem>>, vector<1x8x32xf32>
    tpu.vector_store %arg13[%c0_63, %c0_64, %c0_65], %177 {strides = array<i32>} : memref<1x8x32xf32, #tpu.memory_space<vmem>>, vector<1x8x32xf32>,
    return
  }
  func.func @transform_0(%arg0: i32) -> (i32, i32, i32) {
    %c0_i32 = arith.constant 0 : i32
    %c0_i32_0 = arith.constant 0 : i32
    %c0_i32_1 = arith.constant 0 : i32
    return %arg0, %c0_i32, %c0_i32_0 : i32, i32, i32
  }
  func.func @transform_1(%arg0: i32) -> (i32, i32) {
    %c0_i32 = arith.constant 0 : i32
    %c0_i32_0 = arith.constant 0 : i32
    %c0_i32_1 = arith.constant 0 : i32
    return %c0_i32, %c0_i32_0 : i32, i32
  }
  func.func @transform_2(%arg0: i32) -> (i32, i32) {
    %c0_i32 = arith.constant 0 : i32
    %c0_i32_0 = arith.constant 0 : i32
    %c0_i32_1 = arith.constant 0 : i32
    return %c0_i32, %c0_i32_0 : i32, i32
  }
  func.func @transform_3(%arg0: i32) -> (i32, i32) {
    %c0_i32 = arith.constant 0 : i32
    %c0_i32_0 = arith.constant 0 : i32
    %c0_i32_1 = arith.constant 0 : i32
    return %c0_i32, %c0_i32_0 : i32, i32
  }
  func.func @transform_4(%arg0: i32) -> (i32, i32) {
    %c0_i32 = arith.constant 0 : i32
    %c0_i32_0 = arith.constant 0 : i32
    %c0_i32_1 = arith.constant 0 : i32
    return %c0_i32, %c0_i32_0 : i32, i32
  }
  func.func @transform_5(%arg0: i32) -> (i32, i32) {
    %c0_i32 = arith.constant 0 : i32
    %c0_i32_0 = arith.constant 0 : i32
    %c0_i32_1 = arith.constant 0 : i32
    return %c0_i32, %c0_i32_0 : i32, i32
  }
  func.func @transform_6(%arg0: i32) -> (i32, i32) {
    %c0_i32 = arith.constant 0 : i32
    %c0_i32_0 = arith.constant 0 : i32
    %c0_i32_1 = arith.constant 0 : i32
    return %c0_i32, %c0_i32_0 : i32, i32
  }
  func.func @transform_7(%arg0: i32) -> (i32, i32) {
    %c0_i32 = arith.constant 0 : i32
    %c0_i32_0 = arith.constant 0 : i32
    %c0_i32_1 = arith.constant 0 : i32
    return %c0_i32, %c0_i32_0 : i32, i32
  }
  func.func @transform_8(%arg0: i32) -> (i32, i32) {
    %c0_i32 = arith.constant 0 : i32
    %c0_i32_0 = arith.constant 0 : i32
    %c0_i32_1 = arith.constant 0 : i32
    return %c0_i32, %c0_i32_0 : i32, i32
  }
  func.func @transform_9(%arg0: i32) -> (i32, i32) {
    %c0_i32 = arith.constant 0 : i32
    %c0_i32_0 = arith.constant 0 : i32
    %c0_i32_1 = arith.constant 0 : i32
    return %c0_i32, %c0_i32_0 : i32, i32
  }
  func.func @transform_10(%arg0: i32) -> (i32, i32) {
    %c0_i32 = arith.constant 0 : i32
    %c0_i32_0 = arith.constant 0 : i32
    %c0_i32_1 = arith.constant 0 : i32
    return %c0_i32, %c0_i32_0 : i32, i32
  }
  func.func @transform_11(%arg0: i32) -> (i32, i32) {
    %c0_i32 = arith.constant 0 : i32
    %c0_i32_0 = arith.constant 0 : i32
    %c0_i32_1 = arith.constant 0 : i32
    return %c0_i32, %c0_i32_0 : i32, i32
  }
  func.func @transform_12(%arg0: i32) -> (i32, i32, i32) {
    %c0_i32 = arith.constant 0 : i32
    %c0_i32_0 = arith.constant 0 : i32
    %c0_i32_1 = arith.constant 0 : i32
    return %arg0, %c0_i32, %c0_i32_0 : i32, i32, i32
  }
}

</mosaic_0001>

<llo_original>
// kernel: tpu_custom_call.1
$region0: #{tpu_custom_call.1}
  #allocation0 [shape = 'u32[]', space=smem, size = 0x4, offset = 0x4, fixed_abs, tag = 'smem constant byte address 0x4 - core index']
  #allocation1 [shape = 'u32[144,128]{1,0:T(1,128)}', space=vmem, size = 0x12000, scoped, tag = 'internal scratch']
  %s0 = inlined_call_operand.vmem [shape: f32[2,8,32], index: 0, kind: input, shape index: {}]
  %s1 = inlined_call_operand.vmem [shape: bf16[32,96], index: 1, kind: input, shape index: {}]
  %s2 = inlined_call_operand.vmem [shape: bf16[32,32], index: 2, kind: input, shape index: {}]
  %s3 = inlined_call_operand.vmem [shape: f32[1,32], index: 3, kind: input, shape index: {}]
  %s4 = inlined_call_operand.vmem [shape: f32[1,32], index: 4, kind: input, shape index: {}]
  %s5 = inlined_call_operand.vmem [shape: f32[1,32], index: 5, kind: input, shape index: {}]
  %s6 = inlined_call_operand.vmem [shape: bf16[32,128], index: 6, kind: input, shape index: {}]
  %s7 = inlined_call_operand.vmem [shape: f32[1,128], index: 7, kind: input, shape index: {}]
  %s8 = inlined_call_operand.vmem [shape: bf16[128,32], index: 8, kind: input, shape index: {}]
  %s9 = inlined_call_operand.vmem [shape: f32[1,32], index: 9, kind: input, shape index: {}]
  %s10 = inlined_call_operand.vmem [shape: f32[1,32], index: 10, kind: input, shape index: {}]
  %s11 = inlined_call_operand.vmem [shape: f32[1,32], index: 11, kind: input, shape index: {}]
  %s12 = inlined_call_operand.hbm [shape: f32[2,8,32], index: 12, kind: output, shape index: {}]
  %s13 = sld [smem:[#allocation0]]
  $region81: #{tpu_custom_call.1} parent=0
    _
  %s15 = ssub.s32 1, %s13
  %s16 = scalar_select 0, %s15, %s13
  $region1: #{tpu_custom_call.1} parent=0
    #allocation2 [shape = 'u8[8192]{0}', space=vmem, size = 0x2000, scoped, tag = 'output window, operand 0']
    #allocation3 [shape = 's32[2]{0}', space=sflag, size = 0x8, scoped, tag = 'scoped memory for tpu_custom_call.1']
    %17 = vsyncpa [#allocation3], 0
    %s18 = scalar_lea.sflag [#allocation3], 1
    %19 = vsyncpa %s18, 0
    loop: start=0, step=1, limit=4
    $region2: #{tpu_custom_call.1} parent=1 // loop_pre_header
      _
    $region3: #{tpu_custom_call.1} parent=1 // loop_header
      %s21 = sphi 0, %s25
      %p22 = scmp.ge.s32.totalorder %s21, 4
      %s31 = sphi 0, %s33
      %s34 = sphi 0, %s31
      %s35 = sphi 0, %s34
      %s51 = sphi 0, %s35
      %s55 = sphi 0, %s55
      %s57 = sphi 0, %s55
      %s58 = sphi 0, %s57
      %s72 = sphi 0, %s58
      %s76 = sphi 0, %s76
      %s78 = sphi 0, %s76
      %s79 = sphi 0, %s78
      %s93 = sphi 0, %s79
      %s97 = sphi 0, %s97
      %s99 = sphi 0, %s97
      %s100 = sphi 0, %s99
      %s114 = sphi 0, %s100
      %s118 = sphi 0, %s118
      %s120 = sphi 0, %s118
      %s121 = sphi 0, %s120
      %s135 = sphi 0, %s121
      %s139 = sphi 0, %s139
      %s141 = sphi 0, %s139
      %s142 = sphi 0, %s141
      %s156 = sphi 0, %s142
      %s160 = sphi 0, %s160
      %s162 = sphi 0, %s160
      %s163 = sphi 0, %s162
      %s177 = sphi 0, %s163
      %s181 = sphi 0, %s181
      %s183 = sphi 0, %s181
      %s184 = sphi 0, %s183
      %s198 = sphi 0, %s184
      %s202 = sphi 0, %s202
      %s204 = sphi 0, %s202
      %s205 = sphi 0, %s204
      %s219 = sphi 0, %s205
      %s223 = sphi 0, %s223
      %s225 = sphi 0, %s223
      %s226 = sphi 0, %s225
      %s240 = sphi 0, %s226
      %s244 = sphi 0, %s244
      %s246 = sphi 0, %s244
      %s247 = sphi 0, %s246
      %s261 = sphi 0, %s247
      %s265 = sphi 0, %s265
      %s267 = sphi 0, %s265
      %s268 = sphi 0, %s267
      %s282 = sphi 0, %s268
      %s288 = sphi 0, %s290
      %s291 = sphi 0, %s288
      %s292 = sphi 0, %s291
      %s308 = sphi 0, %s292
    $region4: #{tpu_custom_call.1} parent=1 // loop_header_branch
      %24 = sbr.rel (%p22) target = $region8
    $region5: #{tpu_custom_call.1} parent=1 // loop_body
      %s26 = ssub.s32 %s21, 1
      %s27 = ssub.s32 %s21, 2
      %s28 = sadd.s32 %s21, 1
      %s29 = ssub.s32 %s21, %s28
      %p30 = scmp.eq.s32.totalorder %s29, 0
      %s32 = sadd.s32 %s31, 1
      %s33 = scalar_select %p30, %s31, %s32
      %p36 = pneg %p30
      %p37 = scmp.eq.s32.totalorder %s21, 1
      %p38 = por %p36, %p37
      %p39 = scmp.ne.s32.totalorder %s31, %s34
      %p40 = scmp.eq.s32.totalorder %s21, 0
      %p41 = por %p39, %p40
      %p42 = scmp.ne.s32.totalorder %s31, %s34
      %p43 = scmp.eq.s32.totalorder %s26, 1
      %p44 = por %p42, %p43
      %p45 = scmp.ne.s32.totalorder %s34, %s35
      %p46 = scmp.eq.s32.totalorder %s26, 0
      %p47 = por %p45, %p46
      %p48 = scmp.ne.s32.totalorder %s34, %s35
      %p49 = scmp.eq.s32.totalorder %s27, 1
      %p50 = por %p48, %p49
      %p52 = scmp.ne.s32.totalorder %s35, %s51
      %p53 = scmp.eq.s32.totalorder %s27, 0
      %p54 = por %p52, %p53
      %s56 = sadd.s32 %s55, 1
      %p59 = scmp.eq.s32.totalorder %s21, 1
      %p60 = scmp.ne.s32.totalorder %s55, %s57
      %p61 = scmp.eq.s32.totalorder %s21, 0
      %p62 = por %p60, %p61
      %p63 = scmp.ne.s32.totalorder %s55, %s57
      %p64 = scmp.eq.s32.totalorder %s26, 1
      %p65 = por %p63, %p64
      %p66 = scmp.ne.s32.totalorder %s57, %s58
      %p67 = scmp.eq.s32.totalorder %s26, 0
      %p68 = por %p66, %p67
      %p69 = scmp.ne.s32.totalorder %s57, %s58
      %p70 = scmp.eq.s32.totalorder %s27, 1
      %p71 = por %p69, %p70
      %p73 = scmp.ne.s32.totalorder %s58, %s72
      %p74 = scmp.eq.s32.totalorder %s27, 0
      %p75 = por %p73, %p74
      %s77 = sadd.s32 %s76, 1
      %p80 = scmp.eq.s32.totalorder %s21, 1
      %p81 = scmp.ne.s32.totalorder %s76, %s78
      %p82 = scmp.eq.s32.totalorder %s21, 0
      %p83 = por %p81, %p82
      %p84 = scmp.ne.s32.totalorder %s76, %s78
      %p85 = scmp.eq.s32.totalorder %s26, 1
      %p86 = por %p84, %p85
      %p87 = scmp.ne.s32.totalorder %s78, %s79
      %p88 = scmp.eq.s32.totalorder %s26, 0
      %p89 = por %p87, %p88
      %p90 = scmp.ne.s32.totalorder %s78, %s79
      %p91 = scmp.eq.s32.totalorder %s27, 1
      %p92 = por %p90, %p91
      %p94 = scmp.ne.s32.totalorder %s79, %s93
      %p95 = scmp.eq.s32.totalorder %s27, 0
      %p96 = por %p94, %p95
      %s98 = sadd.s32 %s97, 1
      %p101 = scmp.eq.s32.totalorder %s21, 1
      %p102 = scmp.ne.s32.totalorder %s97, %s99
      %p103 = scmp.eq.s32.totalorder %s21, 0
      %p104 = por %p102, %p103
      %p105 = scmp.ne.s32.totalorder %s97, %s99
      %p106 = scmp.eq.s32.totalorder %s26, 1
      %p107 = por %p105, %p106
      %p108 = scmp.ne.s32.totalorder %s99, %s100
      %p109 = scmp.eq.s32.totalorder %s26, 0
      %p110 = por %p108, %p109
      %p111 = scmp.ne.s32.totalorder %s99, %s100
      %p112 = scmp.eq.s32.totalorder %s27, 1
      %p113 = por %p111, %p112
      %p115 = scmp.ne.s32.totalorder %s100, %s114
      %p116 = scmp.eq.s32.totalorder %s27, 0
      %p117 = por %p115, %p116
      %s119 = sadd.s32 %s118, 1
      %p122 = scmp.eq.s32.totalorder %s21, 1
      %p123 = scmp.ne.s32.totalorder %s118, %s120
      %p124 = scmp.eq.s32.totalorder %s21, 0
      %p125 = por %p123, %p124
      %p126 = scmp.ne.s32.totalorder %s118, %s120
      %p127 = scmp.eq.s32.totalorder %s26, 1
      %p128 = por %p126, %p127
      %p129 = scmp.ne.s32.totalorder %s120, %s121
      %p130 = scmp.eq.s32.totalorder %s26, 0
      %p131 = por %p129, %p130
      %p132 = scmp.ne.s32.totalorder %s120, %s121
      %p133 = scmp.eq.s32.totalorder %s27, 1
      %p134 = por %p132, %p133
      %p136 = scmp.ne.s32.totalorder %s121, %s135
      %p137 = scmp.eq.s32.totalorder %s27, 0
      %p138 = por %p136, %p137
      %s140 = sadd.s32 %s139, 1
      %p143 = scmp.eq.s32.totalorder %s21, 1
      %p144 = scmp.ne.s32.totalorder %s139, %s141
      %p145 = scmp.eq.s32.totalorder %s21, 0
      %p146 = por %p144, %p145
      %p147 = scmp.ne.s32.totalorder %s139, %s141
      %p148 = scmp.eq.s32.totalorder %s26, 1
      %p149 = por %p147, %p148
      %p150 = scmp.ne.s32.totalorder %s141, %s142
      %p151 = scmp.eq.s32.totalorder %s26, 0
      %p152 = por %p150, %p151
      %p153 = scmp.ne.s32.totalorder %s141, %s142
      %p154 = scmp.eq.s32.totalorder %s27, 1
      %p155 = por %p153, %p154
      %p157 = scmp.ne.s32.totalorder %s142, %s156
      %p158 = scmp.eq.s32.totalorder %s27, 0
      %p159 = por %p157, %p158
      %s161 = sadd.s32 %s160, 1
      %p164 = scmp.eq.s32.totalorder %s21, 1
      %p165 = scmp.ne.s32.totalorder %s160, %s162
      %p166 = scmp.eq.s32.totalorder %s21, 0
      %p167 = por %p165, %p166
      %p168 = scmp.ne.s32.totalorder %s160, %s162
      %p169 = scmp.eq.s32.totalorder %s26, 1
      %p170 = por %p168, %p169
      %p171 = scmp.ne.s32.totalorder %s162, %s163
      %p172 = scmp.eq.s32.totalorder %s26, 0
      %p173 = por %p171, %p172
      %p174 = scmp.ne.s32.totalorder %s162, %s163
      %p175 = scmp.eq.s32.totalorder %s27, 1
      %p176 = por %p174, %p175
      %p178 = scmp.ne.s32.totalorder %s163, %s177
      %p179 = scmp.eq.s32.totalorder %s27, 0
      %p180 = por %p178, %p179
      %s182 = sadd.s32 %s181, 1
      %p185 = scmp.eq.s32.totalorder %s21, 1
      %p186 = scmp.ne.s32.totalorder %s181, %s183
      %p187 = scmp.eq.s32.totalorder %s21, 0
      %p188 = por %p186, %p187
      %p189 = scmp.ne.s32.totalorder %s181, %s183
      %p190 = scmp.eq.s32.totalorder %s26, 1
      %p191 = por %p189, %p190
      %p192 = scmp.ne.s32.totalorder %s183, %s184
      %p193 = scmp.eq.s32.totalorder %s26, 0
      %p194 = por %p192, %p193
      %p195 = scmp.ne.s32.totalorder %s183, %s184
      %p196 = scmp.eq.s32.totalorder %s27, 1
      %p197 = por %p195, %p196
      %p199 = scmp.ne.s32.totalorder %s184, %s198
      %p200 = scmp.eq.s32.totalorder %s27, 0
      %p201 = por %p199, %p200
      %s203 = sadd.s32 %s202, 1
      %p206 = scmp.eq.s32.totalorder %s21, 1
      %p207 = scmp.ne.s32.totalorder %s202, %s204
      %p208 = scmp.eq.s32.totalorder %s21, 0
      %p209 = por %p207, %p208
      %p210 = scmp.ne.s32.totalorder %s202, %s204
      %p211 = scmp.eq.s32.totalorder %s26, 1
      %p212 = por %p210, %p211
      %p213 = scmp.ne.s32.totalorder %s204, %s205
      %p214 = scmp.eq.s32.totalorder %s26, 0
      %p215 = por %p213, %p214
      %p216 = scmp.ne.s32.totalorder %s204, %s205
      %p217 = scmp.eq.s32.totalorder %s27, 1
      %p218 = por %p216, %p217
      %p220 = scmp.ne.s32.totalorder %s205, %s219
      %p221 = scmp.eq.s32.totalorder %s27, 0
      %p222 = por %p220, %p221
      %s224 = sadd.s32 %s223, 1
      %p227 = scmp.eq.s32.totalorder %s21, 1
      %p228 = scmp.ne.s32.totalorder %s223, %s225
      %p229 = scmp.eq.s32.totalorder %s21, 0
      %p230 = por %p228, %p229
      %p231 = scmp.ne.s32.totalorder %s223, %s225
      %p232 = scmp.eq.s32.totalorder %s26, 1
      %p233 = por %p231, %p232
      %p234 = scmp.ne.s32.totalorder %s225, %s226
      %p235 = scmp.eq.s32.totalorder %s26, 0
      %p236 = por %p234, %p235
      %p237 = scmp.ne.s32.totalorder %s225, %s226
      %p238 = scmp.eq.s32.totalorder %s27, 1
      %p239 = por %p237, %p238
      %p241 = scmp.ne.s32.totalorder %s226, %s240
      %p242 = scmp.eq.s32.totalorder %s27, 0
      %p243 = por %p241, %p242
      %s245 = sadd.s32 %s244, 1
      %p248 = scmp.eq.s32.totalorder %s21, 1
      %p249 = scmp.ne.s32.totalorder %s244, %s246
      %p250 = scmp.eq.s32.totalorder %s21, 0
      %p251 = por %p249, %p250
      %p252 = scmp.ne.s32.totalorder %s244, %s246
      %p253 = scmp.eq.s32.totalorder %s26, 1
      %p254 = por %p252, %p253
      %p255 = scmp.ne.s32.totalorder %s246, %s247
      %p256 = scmp.eq.s32.totalorder %s26, 0
      %p257 = por %p255, %p256
      %p258 = scmp.ne.s32.totalorder %s246, %s247
      %p259 = scmp.eq.s32.totalorder %s27, 1
      %p260 = por %p258, %p259
      %p262 = scmp.ne.s32.totalorder %s247, %s261
      %p263 = scmp.eq.s32.totalorder %s27, 0
      %p264 = por %p262, %p263
      %s266 = sadd.s32 %s265, 1
      %p269 = scmp.eq.s32.totalorder %s21, 1
      %p270 = scmp.ne.s32.totalorder %s265, %s267
      %p271 = scmp.eq.s32.totalorder %s21, 0
      %p272 = por %p270, %p271
      %p273 = scmp.ne.s32.totalorder %s265, %s267
      %p274 = scmp.eq.s32.totalorder %s26, 1
      %p275 = por %p273, %p274
      %p276 = scmp.ne.s32.totalorder %s267, %s268
      %p277 = scmp.eq.s32.totalorder %s26, 0
      %p278 = por %p276, %p277
      %p279 = scmp.ne.s32.totalorder %s267, %s268
      %p280 = scmp.eq.s32.totalorder %s27, 1
      %p281 = por %p279, %p280
      %p283 = scmp.ne.s32.totalorder %s268, %s282
      %p284 = scmp.eq.s32.totalorder %s27, 0
      %p285 = por %p283, %p284
      %s286 = ssub.s32 %s21, %s28
      %p287 = scmp.eq.s32.totalorder %s286, 0
      %s289 = sadd.s32 %s288, 1
      %s290 = scalar_select %p287, %s288, %s289
      %p293 = pneg %p287
      %p294 = scmp.eq.s32.totalorder %s21, 1
      %p295 = por %p293, %p294
      %p296 = scmp.ne.s32.totalorder %s288, %s291
      %p297 = scmp.eq.s32.totalorder %s21, 0
      %p298 = por %p296, %p297
      %p299 = scmp.ne.s32.totalorder %s288, %s291
      %p300 = scmp.eq.s32.totalorder %s26, 1
      %p301 = por %p299, %p300
      %p302 = scmp.ne.s32.totalorder %s291, %s292
      %p303 = scmp.eq.s32.totalorder %s26, 0
      %p304 = por %p302, %p303
      %p305 = scmp.ne.s32.totalorder %s291, %s292
      %p306 = scmp.eq.s32.totalorder %s27, 1
      %p307 = por %p305, %p306
      %p309 = scmp.ne.s32.totalorder %s292, %s308
      %p310 = scmp.eq.s32.totalorder %s27, 0
      %p311 = por %p309, %p310
      %p312 = scmp.le.s32.totalorder 1, %s21
      %p313 = scmp.lt.s32.totalorder %s21, 3
      %p314 = pnand %p312, %p313
      %p315 = pneg %p314
      // Predicated region
      $region9: #{tpu_custom_call.1} parent=5 // pred_check
        _
      $region10: #{tpu_custom_call.1} parent=5 // pred_check_branch
        %317 = sbr.rel (%p314) target = $region12
      $region11: #{tpu_custom_call.1} parent=5 // pred_region
        %s318 = ssub.s32 %s21, 1
        // Predicated region
        $region13: #{tpu_custom_call.1} parent=11 // pred_check
          %p319 = pneg %p68
        $region14: #{tpu_custom_call.1} parent=11 // pred_check_branch
          %321 = sbr.rel (%p319) target = $region16
        $region15: #{tpu_custom_call.1} parent=11 // pred_region
          _
        $region16: #{tpu_custom_call.1} parent=11 // pred_fallthru
          _
        // Predicated region
        $region17: #{tpu_custom_call.1} parent=11 // pred_check
          %p322 = pneg %p89
        $region18: #{tpu_custom_call.1} parent=11 // pred_check_branch
          %324 = sbr.rel (%p322) target = $region20
        $region19: #{tpu_custom_call.1} parent=11 // pred_region
          _
        $region20: #{tpu_custom_call.1} parent=11 // pred_fallthru
          _
        // Predicated region
        $region21: #{tpu_custom_call.1} parent=11 // pred_check
          %p325 = pneg %p110
        $region22: #{tpu_custom_call.1} parent=11 // pred_check_branch
          %327 = sbr.rel (%p325) target = $region24
        $region23: #{tpu_custom_call.1} parent=11 // pred_region
          _
        $region24: #{tpu_custom_call.1} parent=11 // pred_fallthru
          _
        // Predicated region
        $region25: #{tpu_custom_call.1} parent=11 // pred_check
          %p328 = pneg %p131
        $region26: #{tpu_custom_call.1} parent=11 // pred_check_branch
          %330 = sbr.rel (%p328) target = $region28
        $region27: #{tpu_custom_call.1} parent=11 // pred_region
          _
        $region28: #{tpu_custom_call.1} parent=11 // pred_fallthru
          _
        // Predicated region
        $region29: #{tpu_custom_call.1} parent=11 // pred_check
          %p331 = pneg %p152
        $region30: #{tpu_custom_call.1} parent=11 // pred_check_branch
          %333 = sbr.rel (%p331) target = $region32
        $region31: #{tpu_custom_call.1} parent=11 // pred_region
          _
        $region32: #{tpu_custom_call.1} parent=11 // pred_fallthru
          _
        // Predicated region
        $region33: #{tpu_custom_call.1} parent=11 // pred_check
          %p334 = pneg %p173
        $region34: #{tpu_custom_call.1} parent=11 // pred_check_branch
          %336 = sbr.rel (%p334) target = $region36
        $region35: #{tpu_custom_call.1} parent=11 // pred_region
          _
        $region36: #{tpu_custom_call.1} parent=11 // pred_fallthru
          _
        // Predicated region
        $region37: #{tpu_custom_call.1} parent=11 // pred_check
          %p337 = pneg %p194
        $region38: #{tpu_custom_call.1} parent=11 // pred_check_branch
          %339 = sbr.rel (%p337) target = $region40
        $region39: #{tpu_custom_call.1} parent=11 // pred_region
          _
        $region40: #{tpu_custom_call.1} parent=11 // pred_fallthru
          _
        // Predicated region
        $region41: #{tpu_custom_call.1} parent=11 // pred_check
          %p340 = pneg %p215
        $region42: #{tpu_custom_call.1} parent=11 // pred_check_branch
          %342 = sbr.rel (%p340) target = $region44
        $region43: #{tpu_custom_call.1} parent=11 // pred_region
          _
        $region44: #{tpu_custom_call.1} parent=11 // pred_fallthru
          _
        // Predicated region
        $region45: #{tpu_custom_call.1} parent=11 // pred_check
          %p343 = pneg %p236
        $region46: #{tpu_custom_call.1} parent=11 // pred_check_branch
          %345 = sbr.rel (%p343) target = $region48
        $region47: #{tpu_custom_call.1} parent=11 // pred_region
          _
        $region48: #{tpu_custom_call.1} parent=11 // pred_fallthru
          _
        // Predicated region
        $region49: #{tpu_custom_call.1} parent=11 // pred_check
          %p346 = pneg %p257
        $region50: #{tpu_custom_call.1} parent=11 // pred_check_branch
          %348 = sbr.rel (%p346) target = $region52
        $region51: #{tpu_custom_call.1} parent=11 // pred_region
          _
        $region52: #{tpu_custom_call.1} parent=11 // pred_fallthru
          _
        // Predicated region
        $region53: #{tpu_custom_call.1} parent=11 // pred_check
          %p349 = pneg %p278
        $region54: #{tpu_custom_call.1} parent=11 // pred_check_branch
          %351 = sbr.rel (%p349) target = $region56
        $region55: #{tpu_custom_call.1} parent=11 // pred_region
          _
        $region56: #{tpu_custom_call.1} parent=11 // pred_fallthru
          _
      $region12: #{tpu_custom_call.1} parent=5 // pred_fallthru
        _
      %p352 = scmp.lt.s32.totalorder %s21, 2
      // Predicated region
      $region57: #{tpu_custom_call.1} parent=5 // pred_check
        %p353 = pneg %p352
      $region58: #{tpu_custom_call.1} parent=5 // pred_check_branch
        %355 = sbr.rel (%p353) target = $region60
      $region59: #{tpu_custom_call.1} parent=5 // pred_region
        // Predicated region
        $region61: #{tpu_custom_call.1} parent=59 // pred_check
          %p356 = pneg %p41
        $region62: #{tpu_custom_call.1} parent=59 // pred_check_branch
          %358 = sbr.rel (%p356) target = $region64
        $region63: #{tpu_custom_call.1} parent=59 // pred_region
          %p359 = scmp.lt.s32.totalorder %s21, 1
          %s360 = scalar_select %p359, %s21, 1
          %s361 = smul.addr %s360, 8
          %s362 = scalar_lea.vmem %s0, %s361
        $region64: #{tpu_custom_call.1} parent=59 // pred_fallthru
          _
      $region60: #{tpu_custom_call.1} parent=5 // pred_fallthru
        _
      %p363 = scmp.le.s32.totalorder 1, %s21
      %p364 = scmp.lt.s32.totalorder %s21, 3
      %p365 = pnand %p363, %p364
      %p366 = pneg %p365
      // Predicated region
      $region65: #{tpu_custom_call.1} parent=5 // pred_check
        _
      $region66: #{tpu_custom_call.1} parent=5 // pred_check_branch
        %368 = sbr.rel (%p365) target = $region68
      $region67: #{tpu_custom_call.1} parent=5 // pred_region
        %s369 = ssub.s32 %s21, 1
        %p370 = scmp.lt.s32.totalorder %s26, 1
        %s371 = scalar_select %p370, %s26, 1
        %s372 = smul.addr %s371, 8
        %s373 = scalar_lea.vmem %s0, %s372
        %p374 = pneg %p47
        %p375 = pneg %p44
        %p376 = pneg %p68
        %p377 = pneg %p65
        %p378 = pneg %p89
        %p379 = pneg %p86
        %p380 = pneg %p110
        %p381 = pneg %p107
        %p382 = pneg %p131
        %p383 = pneg %p128
        %p384 = pneg %p152
        %p385 = pneg %p149
        %p386 = pneg %p173
        %p387 = pneg %p170
        %p388 = pneg %p194
        %p389 = pneg %p191
        %p390 = pneg %p215
        %p391 = pneg %p212
        %p392 = pneg %p236
        %p393 = pneg %p233
        %p394 = pneg %p257
        %p395 = pneg %p254
        %p396 = pneg %p278
        %p397 = pneg %p275
        %p398 = pneg %p304
        %p399 = pneg %p301
        %s400 = sand.u32 %s291, 1
        %s401 = scalar_lea.sflag [#allocation3], %s400
        %s402 = sand.u32 %s291, 1
        %s403 = smul.addr %s402, 8
        %s404 = scalar_lea.vmem [#allocation2], %s403
        %p405 = scmp.lt.s32.totalorder %s26, 1
        %s406 = scalar_select %p405, %s26, 1
        %s407 = smul.addr %s406, 8
        %s408 = scalar_lea.vmem %s0, %s407
        %v410 = vld [vmem:[%s408] sm:$0xff]
        %v411 = vpack.c.bf16 %v410, %v410
        %v412 = vld [vmem:[%s1] sm:$0xf]
        %v413 = vld [vmem:[%s1 + $0x4] sm:$0xf]
        %v414 = vld [vmem:[%s1 + $0x8] sm:$0xf]
        %v415 = vld [vmem:[%s1 + $0xc] sm:$0xf]
        %v420 = vunpack.c.l.b16 %v412
        %v421 = vunpack.c.l.b16 %v413
        %v422 = vunpack.c.l.b16 %v414
        %v423 = vunpack.c.l.b16 %v415
        %v424 = vpack.c.b16 %v421, %v420
        %v425 = vpack.c.b16 %v423, %v422
        %vm428 = vcmask 261120
        %v430 = vsel %vm428, %v411, 0
        %432 = vmatprep.subr.bf16.mxu0 0
        %433 = vmatpush1.bf16.msra.mxu0 %v424
        %434 = vmatprep.subr.bf16.mxu0 0
        %435 = vmatpush1.bf16.msra.mxu0 %v425
        %436 = vmatprep.subr.bf16.mxu0 0
        %437 = vmatpush1.bf16.msra.mxu0 0
        %438 = vmatprep.subr.bf16.mxu0 0
        %439 = vmatpush1.bf16.msra.mxu0 0
        %440 = vmatprep.subr.bf16.mxu0 0
        %441 = vmatpush1.bf16.msra.mxu0 0
        %442 = vmatprep.subr.bf16.mxu0 0
        %443 = vmatpush1.bf16.msra.mxu0 0
        %444 = vmatprep.subr.bf16.mxu0 0
        %445 = vmatpush1.bf16.msra.mxu0 0
        %446 = vmatprep.subr.bf16.mxu0 0
        %447 = vmatpush1.bf16.msra.mxu0 0
        %448 = vmatprep.subr.bf16.mxu0 0
        %449 = vmatpush1.bf16.msra.mxu0 0
        %450 = vmatprep.subr.bf16.mxu0 0
        %451 = vmatpush1.bf16.msra.mxu0 0
        %452 = vmatprep.subr.bf16.mxu0 0
        %453 = vmatpush1.bf16.msra.mxu0 0
        %454 = vmatprep.subr.bf16.mxu0 0
        %455 = vmatpush1.bf16.msra.mxu0 0
        %456 = vmatprep.subr.bf16.mxu0 0
        %457 = vmatpush1.bf16.msra.mxu0 0
        %458 = vmatprep.subr.bf16.mxu0 0
        %459 = vmatpush1.bf16.msra.mxu0 0
        %460 = vmatprep.subr.bf16.mxu0 0
        %461 = vmatpush1.bf16.msra.mxu0 0
        %462 = vmatprep.subr.bf16.mxu0 0
        %463 = vmatpush1.bf16.msra.mxu0 0
        %464 = vmatprep.mubr.bf16.mxu0 0
        %465 = vmatmul.mubr.bf16.gmra.mrb[0].mxu0 %v430
        %v466 = vpop.f32.mrb[0].mxu0
        %v467 = vadd.f32 0.0, %v466
        %v468 = vpop.f32.mrb[0].mxu0
        %v469 = vpop.f32.mrb[0].mxu0
        %v470 = vpop.f32.mrb[0].mxu0
        %471 = vdwg.mxu0
        %v472 = vpack.c.bf16 %v467, %v467
        %474 = vrot.lane.b32.xlu0 %v472, 96
        %v475 = vpop.permute.xlu0 %474
        %vm476 = vcmask 64512
        %v478 = vsel %vm476, %v472, 0
        %v481 = vsel %vm476, %v475, 0
        %483 = vmatprep.subr.bf16.mxu0 0
        %484 = vmatpush1.bf16.xpose.msra.mxu0 %v481
        %485 = vmatprep.subr.bf16.mxu0 0
        %486 = vmatpush1.bf16.xpose.msra.mxu0 0
        %487 = vmatprep.subr.bf16.mxu0 0
        %488 = vmatpush1.bf16.xpose.msra.mxu0 0
        %489 = vmatprep.subr.bf16.mxu0 0
        %490 = vmatpush1.bf16.xpose.msra.mxu0 0
        %491 = vmatprep.subr.bf16.mxu0 0
        %492 = vmatpush1.bf16.xpose.msra.mxu0 0
        %493 = vmatprep.subr.bf16.mxu0 0
        %494 = vmatpush1.bf16.xpose.msra.mxu0 0
        %495 = vmatprep.subr.bf16.mxu0 0
        %496 = vmatpush1.bf16.xpose.msra.mxu0 0
        %497 = vmatprep.subr.bf16.mxu0 0
        %498 = vmatpush1.bf16.xpose.msra.mxu0 0
        %499 = vmatprep.subr.bf16.mxu0 0
        %500 = vmatpush1.bf16.xpose.msra.mxu0 0
        %501 = vmatprep.subr.bf16.mxu0 0
        %502 = vmatpush1.bf16.xpose.msra.mxu0 0
        %503 = vmatprep.subr.bf16.mxu0 0
        %504 = vmatpush1.bf16.xpose.msra.mxu0 0
        %505 = vmatprep.subr.bf16.mxu0 0
        %506 = vmatpush1.bf16.xpose.msra.mxu0 0
        %507 = vmatprep.subr.bf16.mxu0 0
        %508 = vmatpush1.bf16.xpose.msra.mxu0 0
        %509 = vmatprep.subr.bf16.mxu0 0
        %510 = vmatpush1.bf16.xpose.msra.mxu0 0
        %511 = vmatprep.subr.bf16.mxu0 0
        %512 = vmatpush1.bf16.xpose.msra.mxu0 0
        %513 = vmatprep.subr.bf16.mxu0 0
        %514 = vmatpush1.bf16.xpose.msra.mxu0 0
        %515 = vmatprep.mubr.bf16.mxu0 0
        %516 = vmatmul.mubr.bf16.gmra.mrb[0].mxu0 %v478
        %v517 = vpop.f32.mrb[0].mxu0
        %v518 = vadd.f32 0.0, %v517
        %v519 = vpop.f32.mrb[0].mxu0
        %v520 = vpop.f32.mrb[0].mxu0
        %v521 = vpop.f32.mrb[0].mxu0
        %522 = vdwg.mxu0
        %v523 = vsel %vm476, %v518, -inf
        %524 = vmax.xlane.f32.xlu0 %v523
        %v525 = vpop.xlane.xlu0 %524
        %v526 = vsub.f32 %v518, %v525
        %v527 = vmul.f32 %v526, 1.442695
        %v528 = vpow.pop %v527
        %v529 = vsel %vm476, %v528, 0.0
        %530 = vadd.xlane.f32.xlu0 %v529
        %v531 = vpop.xlane.xlu0 %530
        %v532 = vrcp.pop %v531
        %v533 = vmul.f32 %v528, %v532
        %v534 = vpack.c.bf16 %v533, %v533
        %535 = vrot.lane.b32.xlu0 %v472, 64
        %v536 = vpop.permute.xlu0 %535
        %v538 = vsel %vm476, %v534, 0
        %vm540 = vcmask 1043456
        %v542 = vsel %vm540, %v536, 0
        %544 = vmatprep.subr.bf16.mxu0 0
        %545 = vmatpush1.bf16.msra.mxu0 %v542
        %546 = vmatprep.subr.bf16.mxu0 0
        %547 = vmatpush1.bf16.msra.mxu0 0
        %548 = vmatprep.subr.bf16.mxu0 0
        %549 = vmatpush1.bf16.msra.mxu0 0
        %550 = vmatprep.subr.bf16.mxu0 0
        %551 = vmatpush1.bf16.msra.mxu0 0
        %552 = vmatprep.subr.bf16.mxu0 0
        %553 = vmatpush1.bf16.msra.mxu0 0
        %554 = vmatprep.subr.bf16.mxu0 0
        %555 = vmatpush1.bf16.msra.mxu0 0
        %556 = vmatprep.subr.bf16.mxu0 0
        %557 = vmatpush1.bf16.msra.mxu0 0
        %558 = vmatprep.subr.bf16.mxu0 0
        %559 = vmatpush1.bf16.msra.mxu0 0
        %560 = vmatprep.subr.bf16.mxu0 0
        %561 = vmatpush1.bf16.msra.mxu0 0
        %562 = vmatprep.subr.bf16.mxu0 0
        %563 = vmatpush1.bf16.msra.mxu0 0
        %564 = vmatprep.subr.bf16.mxu0 0
        %565 = vmatpush1.bf16.msra.mxu0 0
        %566 = vmatprep.subr.bf16.mxu0 0
        %567 = vmatpush1.bf16.msra.mxu0 0
        %568 = vmatprep.subr.bf16.mxu0 0
        %569 = vmatpush1.bf16.msra.mxu0 0
        %570 = vmatprep.subr.bf16.mxu0 0
        %571 = vmatpush1.bf16.msra.mxu0 0
        %572 = vmatprep.subr.bf16.mxu0 0
        %573 = vmatpush1.bf16.msra.mxu0 0
        %574 = vmatprep.subr.bf16.mxu0 0
        %575 = vmatpush1.bf16.msra.mxu0 0
        %576 = vmatprep.mubr.bf16.mxu0 0
        %577 = vmatmul.mubr.bf16.gmra.mrb[0].mxu0 %v538
        %v578 = vpop.f32.mrb[0].mxu0
        %v579 = vadd.f32 0.0, %v578
        %v580 = vpop.f32.mrb[0].mxu0
        %v581 = vpop.f32.mrb[0].mxu0
        %v582 = vpop.f32.mrb[0].mxu0
        %583 = vdwg.mxu0
        %v584 = vpack.c.bf16 %v579, %v579
        %v585 = vld [vmem:[%s2] sm:$0xf]
        %586 = vrot.lane.b32.xlu0 %v472, 120
        %v587 = vpop.permute.xlu0 %586
        %588 = vrot.lane.b32.xlu0 %v472, 88
        %v589 = vpop.permute.xlu0 %588
        %v591 = vsel %vm476, %v587, 0
        %v594 = vsel %vm476, %v589, 0
        %596 = vmatprep.subr.bf16.mxu0 0
        %597 = vmatpush1.bf16.xpose.msra.mxu0 %v594
        %598 = vmatprep.subr.bf16.mxu0 0
        %599 = vmatpush1.bf16.xpose.msra.mxu0 0
        %600 = vmatprep.subr.bf16.mxu0 0
        %601 = vmatpush1.bf16.xpose.msra.mxu0 0
        %602 = vmatprep.subr.bf16.mxu0 0
        %603 = vmatpush1.bf16.xpose.msra.mxu0 0
        %604 = vmatprep.subr.bf16.mxu0 0
        %605 = vmatpush1.bf16.xpose.msra.mxu0 0
        %606 = vmatprep.subr.bf16.mxu0 0
        %607 = vmatpush1.bf16.xpose.msra.mxu0 0
        %608 = vmatprep.subr.bf16.mxu0 0
        %609 = vmatpush1.bf16.xpose.msra.mxu0 0
        %610 = vmatprep.subr.bf16.mxu0 0
        %611 = vmatpush1.bf16.xpose.msra.mxu0 0
        %612 = vmatprep.subr.bf16.mxu0 0
        %613 = vmatpush1.bf16.xpose.msra.mxu0 0
        %614 = vmatprep.subr.bf16.mxu0 0
        %615 = vmatpush1.bf16.xpose.msra.mxu0 0
        %616 = vmatprep.subr.bf16.mxu0 0
        %617 = vmatpush1.bf16.xpose.msra.mxu0 0
        %618 = vmatprep.subr.bf16.mxu0 0
        %619 = vmatpush1.bf16.xpose.msra.mxu0 0
        %620 = vmatprep.subr.bf16.mxu0 0
        %621 = vmatpush1.bf16.xpose.msra.mxu0 0
        %622 = vmatprep.subr.bf16.mxu0 0
        %623 = vmatpush1.bf16.xpose.msra.mxu0 0
        %624 = vmatprep.subr.bf16.mxu0 0
        %625 = vmatpush1.bf16.xpose.msra.mxu0 0
        %626 = vmatprep.subr.bf16.mxu0 0
        %627 = vmatpush1.bf16.xpose.msra.mxu0 0
        %628 = vmatprep.mubr.bf16.mxu0 0
        %629 = vmatmul.mubr.bf16.gmra.mrb[0].mxu0 %v591
        %v630 = vpop.f32.mrb[0].mxu0
        %v631 = vadd.f32 0.0, %v630
        %v632 = vpop.f32.mrb[0].mxu0
        %v633 = vpop.f32.mrb[0].mxu0
        %v634 = vpop.f32.mrb[0].mxu0
        %635 = vdwg.mxu0
        %v636 = vsel %vm476, %v631, -inf
        %637 = vmax.xlane.f32.xlu0 %v636
        %v638 = vpop.xlane.xlu0 %637
        %v639 = vsub.f32 %v631, %v638
        %v640 = vmul.f32 %v639, 1.442695
        %v641 = vpow.pop %v640
        %v642 = vsel %vm476, %v641, 0.0
        %643 = vadd.xlane.f32.xlu0 %v642
        %v644 = vpop.xlane.xlu0 %643
        %v645 = vrcp.pop %v644
        %v646 = vmul.f32 %v641, %v645
        %v647 = vpack.c.bf16 %v646, %v646
        %648 = vrot.lane.b32.xlu0 %v472, 56
        %v649 = vpop.permute.xlu0 %648
        %v651 = vsel %vm476, %v647, 0
        %v654 = vsel %vm540, %v649, 0
        %656 = vmatprep.subr.bf16.mxu0 0
        %657 = vmatpush1.bf16.msra.mxu0 %v654
        %658 = vmatprep.subr.bf16.mxu0 0
        %659 = vmatpush1.bf16.msra.mxu0 0
        %660 = vmatprep.subr.bf16.mxu0 0
        %661 = vmatpush1.bf16.msra.mxu0 0
        %662 = vmatprep.subr.bf16.mxu0 0
        %663 = vmatpush1.bf16.msra.mxu0 0
        %664 = vmatprep.subr.bf16.mxu0 0
        %665 = vmatpush1.bf16.msra.mxu0 0
        %666 = vmatprep.subr.bf16.mxu0 0
        %667 = vmatpush1.bf16.msra.mxu0 0
        %668 = vmatprep.subr.bf16.mxu0 0
        %669 = vmatpush1.bf16.msra.mxu0 0
        %670 = vmatprep.subr.bf16.mxu0 0
        %671 = vmatpush1.bf16.msra.mxu0 0
        %672 = vmatprep.subr.bf16.mxu0 0
        %673 = vmatpush1.bf16.msra.mxu0 0
        %674 = vmatprep.subr.bf16.mxu0 0
        %675 = vmatpush1.bf16.msra.mxu0 0
        %676 = vmatprep.subr.bf16.mxu0 0
        %677 = vmatpush1.bf16.msra.mxu0 0
        %678 = vmatprep.subr.bf16.mxu0 0
        %679 = vmatpush1.bf16.msra.mxu0 0
        %680 = vmatprep.subr.bf16.mxu0 0
        %681 = vmatpush1.bf16.msra.mxu0 0
        %682 = vmatprep.subr.bf16.mxu0 0
        %683 = vmatpush1.bf16.msra.mxu0 0
        %684 = vmatprep.subr.bf16.mxu0 0
        %685 = vmatpush1.bf16.msra.mxu0 0
        %686 = vmatprep.subr.bf16.mxu0 0
        %687 = vmatpush1.bf16.msra.mxu0 0
        %688 = vmatprep.mubr.bf16.mxu0 0
        %689 = vmatmul.mubr.bf16.gmra.mrb[0].mxu0 %v651
        %v690 = vpop.f32.mrb[0].mxu0
        %v691 = vadd.f32 0.0, %v690
        %v692 = vpop.f32.mrb[0].mxu0
        %v693 = vpop.f32.mrb[0].mxu0
        %v694 = vpop.f32.mrb[0].mxu0
        %695 = vdwg.mxu0
        %v696 = vpack.c.bf16 %v691, %v691
        %v697 = vld [vmem:[%s2 + $0x4] sm:$0xf]
        %v699 = vsel %vm476, %v696, 0
        %v702 = vsel %vm540, %v697, 0
        %704 = vmatprep.subr.bf16.mxu0 0
        %705 = vmatpush1.bf16.msra.mxu0 %v702
        %706 = vmatprep.subr.bf16.mxu0 0
        %707 = vmatpush1.bf16.msra.mxu0 0
        %708 = vmatprep.subr.bf16.mxu0 0
        %709 = vmatpush1.bf16.msra.mxu0 0
        %710 = vmatprep.subr.bf16.mxu0 0
        %711 = vmatpush1.bf16.msra.mxu0 0
        %712 = vmatprep.subr.bf16.mxu0 0
        %713 = vmatpush1.bf16.msra.mxu0 0
        %714 = vmatprep.subr.bf16.mxu0 0
        %715 = vmatpush1.bf16.msra.mxu0 0
        %716 = vmatprep.subr.bf16.mxu0 0
        %717 = vmatpush1.bf16.msra.mxu0 0
        %718 = vmatprep.subr.bf16.mxu0 0
        %719 = vmatpush1.bf16.msra.mxu0 0
        %720 = vmatprep.subr.bf16.mxu0 0
        %721 = vmatpush1.bf16.msra.mxu0 0
        %722 = vmatprep.subr.bf16.mxu0 0
        %723 = vmatpush1.bf16.msra.mxu0 0
        %724 = vmatprep.subr.bf16.mxu0 0
        %725 = vmatpush1.bf16.msra.mxu0 0
        %726 = vmatprep.subr.bf16.mxu0 0
        %727 = vmatpush1.bf16.msra.mxu0 0
        %728 = vmatprep.subr.bf16.mxu0 0
        %729 = vmatpush1.bf16.msra.mxu0 0
        %730 = vmatprep.subr.bf16.mxu0 0
        %731 = vmatpush1.bf16.msra.mxu0 0
        %732 = vmatprep.subr.bf16.mxu0 0
        %733 = vmatpush1.bf16.msra.mxu0 0
        %734 = vmatprep.subr.bf16.mxu0 0
        %735 = vmatpush1.bf16.msra.mxu0 0
        %736 = vmatprep.mubr.bf16.mxu0 0
        %737 = vmatmul.mubr.bf16.gmra.mrb[0].mxu0 %v699
        %v738 = vpop.f32.mrb[0].mxu0
        %v739 = vadd.f32 0.0, %v738
        %v740 = vpop.f32.mrb[0].mxu0
        %v741 = vpop.f32.mrb[0].mxu0
        %v742 = vpop.f32.mrb[0].mxu0
        %743 = vdwg.mxu0
        %v745 = vsel %vm476, %v584, 0
        %v748 = vsel %vm540, %v585, 0
        %750 = vmatprep.subr.bf16.mxu0 0
        %751 = vmatpush1.bf16.msra.mxu0 %v748
        %752 = vmatprep.subr.bf16.mxu0 0
        %753 = vmatpush1.bf16.msra.mxu0 0
        %754 = vmatprep.subr.bf16.mxu0 0
        %755 = vmatpush1.bf16.msra.mxu0 0
        %756 = vmatprep.subr.bf16.mxu0 0
        %757 = vmatpush1.bf16.msra.mxu0 0
        %758 = vmatprep.subr.bf16.mxu0 0
        %759 = vmatpush1.bf16.msra.mxu0 0
        %760 = vmatprep.subr.bf16.mxu0 0
        %761 = vmatpush1.bf16.msra.mxu0 0
        %762 = vmatprep.subr.bf16.mxu0 0
        %763 = vmatpush1.bf16.msra.mxu0 0
        %764 = vmatprep.subr.bf16.mxu0 0
        %765 = vmatpush1.bf16.msra.mxu0 0
        %766 = vmatprep.subr.bf16.mxu0 0
        %767 = vmatpush1.bf16.msra.mxu0 0
        %768 = vmatprep.subr.bf16.mxu0 0
        %769 = vmatpush1.bf16.msra.mxu0 0
        %770 = vmatprep.subr.bf16.mxu0 0
        %771 = vmatpush1.bf16.msra.mxu0 0
        %772 = vmatprep.subr.bf16.mxu0 0
        %773 = vmatpush1.bf16.msra.mxu0 0
        %774 = vmatprep.subr.bf16.mxu0 0
        %775 = vmatpush1.bf16.msra.mxu0 0
        %776 = vmatprep.subr.bf16.mxu0 0
        %777 = vmatpush1.bf16.msra.mxu0 0
        %778 = vmatprep.subr.bf16.mxu0 0
        %779 = vmatpush1.bf16.msra.mxu0 0
        %780 = vmatprep.subr.bf16.mxu0 0
        %781 = vmatpush1.bf16.msra.mxu0 0
        %782 = vmatprep.mubr.bf16.mxu0 0
        %783 = vmatmul.mubr.bf16.gmra.mrb[0].mxu0 %v745
        %v784 = vpop.f32.mrb[0].mxu0
        %v785 = vadd.f32 %v739, %v784
        %v786 = vpop.f32.mrb[0].mxu0
        %v787 = vpop.f32.mrb[0].mxu0
        %v788 = vpop.f32.mrb[0].mxu0
        %789 = vdwg.mxu0
        %790 = vrot.lane.b32.xlu0 %v472, 112
        %v791 = vpop.permute.xlu0 %790
        %792 = vrot.lane.b32.xlu0 %v472, 80
        %v793 = vpop.permute.xlu0 %792
        %v795 = vsel %vm476, %v791, 0
        %v798 = vsel %vm476, %v793, 0
        %800 = vmatprep.subr.bf16.mxu0 0
        %801 = vmatpush1.bf16.xpose.msra.mxu0 %v798
        %802 = vmatprep.subr.bf16.mxu0 0
        %803 = vmatpush1.bf16.xpose.msra.mxu0 0
        %804 = vmatprep.subr.bf16.mxu0 0
        %805 = vmatpush1.bf16.xpose.msra.mxu0 0
        %806 = vmatprep.subr.bf16.mxu0 0
        %807 = vmatpush1.bf16.xpose.msra.mxu0 0
        %808 = vmatprep.subr.bf16.mxu0 0
        %809 = vmatpush1.bf16.xpose.msra.mxu0 0
        %810 = vmatprep.subr.bf16.mxu0 0
        %811 = vmatpush1.bf16.xpose.msra.mxu0 0
        %812 = vmatprep.subr.bf16.mxu0 0
        %813 = vmatpush1.bf16.xpose.msra.mxu0 0
        %814 = vmatprep.subr.bf16.mxu0 0
        %815 = vmatpush1.bf16.xpose.msra.mxu0 0
        %816 = vmatprep.subr.bf16.mxu0 0
        %817 = vmatpush1.bf16.xpose.msra.mxu0 0
        %818 = vmatprep.subr.bf16.mxu0 0
        %819 = vmatpush1.bf16.xpose.msra.mxu0 0
        %820 = vmatprep.subr.bf16.mxu0 0
        %821 = vmatpush1.bf16.xpose.msra.mxu0 0
        %822 = vmatprep.subr.bf16.mxu0 0
        %823 = vmatpush1.bf16.xpose.msra.mxu0 0
        %824 = vmatprep.subr.bf16.mxu0 0
        %825 = vmatpush1.bf16.xpose.msra.mxu0 0
        %826 = vmatprep.subr.bf16.mxu0 0
        %827 = vmatpush1.bf16.xpose.msra.mxu0 0
        %828 = vmatprep.subr.bf16.mxu0 0
        %829 = vmatpush1.bf16.xpose.msra.mxu0 0
        %830 = vmatprep.subr.bf16.mxu0 0
        %831 = vmatpush1.bf16.xpose.msra.mxu0 0
        %832 = vmatprep.mubr.bf16.mxu0 0
        %833 = vmatmul.mubr.bf16.gmra.mrb[0].mxu0 %v795
        %v834 = vpop.f32.mrb[0].mxu0
        %v835 = vadd.f32 0.0, %v834
        %v836 = vpop.f32.mrb[0].mxu0
        %v837 = vpop.f32.mrb[0].mxu0
        %v838 = vpop.f32.mrb[0].mxu0
        %839 = vdwg.mxu0
        %v840 = vsel %vm476, %v835, -inf
        %841 = vmax.xlane.f32.xlu0 %v840
        %v842 = vpop.xlane.xlu0 %841
        %v843 = vsub.f32 %v835, %v842
        %v844 = vmul.f32 %v843, 1.442695
        %v845 = vpow.pop %v844
        %v846 = vsel %vm476, %v845, 0.0
        %847 = vadd.xlane.f32.xlu0 %v846
        %v848 = vpop.xlane.xlu0 %847
        %v849 = vrcp.pop %v848
        %v850 = vmul.f32 %v845, %v849
        %v851 = vpack.c.bf16 %v850, %v850
        %852 = vrot.lane.b32.xlu0 %v472, 48
        %v853 = vpop.permute.xlu0 %852
        %v855 = vsel %vm476, %v851, 0
        %v858 = vsel %vm540, %v853, 0
        %860 = vmatprep.subr.bf16.mxu0 0
        %861 = vmatpush1.bf16.msra.mxu0 %v858
        %862 = vmatprep.subr.bf16.mxu0 0
        %863 = vmatpush1.bf16.msra.mxu0 0
        %864 = vmatprep.subr.bf16.mxu0 0
        %865 = vmatpush1.bf16.msra.mxu0 0
        %866 = vmatprep.subr.bf16.mxu0 0
        %867 = vmatpush1.bf16.msra.mxu0 0
        %868 = vmatprep.subr.bf16.mxu0 0
        %869 = vmatpush1.bf16.msra.mxu0 0
        %870 = vmatprep.subr.bf16.mxu0 0
        %871 = vmatpush1.bf16.msra.mxu0 0
        %872 = vmatprep.subr.bf16.mxu0 0
        %873 = vmatpush1.bf16.msra.mxu0 0
        %874 = vmatprep.subr.bf16.mxu0 0
        %875 = vmatpush1.bf16.msra.mxu0 0
        %876 = vmatprep.subr.bf16.mxu0 0
        %877 = vmatpush1.bf16.msra.mxu0 0
        %878 = vmatprep.subr.bf16.mxu0 0
        %879 = vmatpush1.bf16.msra.mxu0 0
        %880 = vmatprep.subr.bf16.mxu0 0
        %881 = vmatpush1.bf16.msra.mxu0 0
        %882 = vmatprep.subr.bf16.mxu0 0
        %883 = vmatpush1.bf16.msra.mxu0 0
        %884 = vmatprep.subr.bf16.mxu0 0
        %885 = vmatpush1.bf16.msra.mxu0 0
        %886 = vmatprep.subr.bf16.mxu0 0
        %887 = vmatpush1.bf16.msra.mxu0 0
        %888 = vmatprep.subr.bf16.mxu0 0
        %889 = vmatpush1.bf16.msra.mxu0 0
        %890 = vmatprep.subr.bf16.mxu0 0
        %891 = vmatpush1.bf16.msra.mxu0 0
        %892 = vmatprep.mubr.bf16.mxu0 0
        %893 = vmatmul.mubr.bf16.gmra.mrb[0].mxu0 %v855
        %v894 = vpop.f32.mrb[0].mxu0
        %v895 = vadd.f32 0.0, %v894
        %v896 = vpop.f32.mrb[0].mxu0
        %v897 = vpop.f32.mrb[0].mxu0
        %v898 = vpop.f32.mrb[0].mxu0
        %899 = vdwg.mxu0
        %v900 = vpack.c.bf16 %v895, %v895
        %v901 = vld [vmem:[%s2 + $0x8] sm:$0xf]
        %v903 = vsel %vm476, %v900, 0
        %v906 = vsel %vm540, %v901, 0
        %908 = vmatprep.subr.bf16.mxu0 0
        %909 = vmatpush1.bf16.msra.mxu0 %v906
        %910 = vmatprep.subr.bf16.mxu0 0
        %911 = vmatpush1.bf16.msra.mxu0 0
        %912 = vmatprep.subr.bf16.mxu0 0
        %913 = vmatpush1.bf16.msra.mxu0 0
        %914 = vmatprep.subr.bf16.mxu0 0
        %915 = vmatpush1.bf16.msra.mxu0 0
        %916 = vmatprep.subr.bf16.mxu0 0
        %917 = vmatpush1.bf16.msra.mxu0 0
        %918 = vmatprep.subr.bf16.mxu0 0
        %919 = vmatpush1.bf16.msra.mxu0 0
        %920 = vmatprep.subr.bf16.mxu0 0
        %921 = vmatpush1.bf16.msra.mxu0 0
        %922 = vmatprep.subr.bf16.mxu0 0
        %923 = vmatpush1.bf16.msra.mxu0 0
        %924 = vmatprep.subr.bf16.mxu0 0
        %925 = vmatpush1.bf16.msra.mxu0 0
        %926 = vmatprep.subr.bf16.mxu0 0
        %927 = vmatpush1.bf16.msra.mxu0 0
        %928 = vmatprep.subr.bf16.mxu0 0
        %929 = vmatpush1.bf16.msra.mxu0 0
        %930 = vmatprep.subr.bf16.mxu0 0
        %931 = vmatpush1.bf16.msra.mxu0 0
        %932 = vmatprep.subr.bf16.mxu0 0
        %933 = vmatpush1.bf16.msra.mxu0 0
        %934 = vmatprep.subr.bf16.mxu0 0
        %935 = vmatpush1.bf16.msra.mxu0 0
        %936 = vmatprep.subr.bf16.mxu0 0
        %937 = vmatpush1.bf16.msra.mxu0 0
        %938 = vmatprep.subr.bf16.mxu0 0
        %939 = vmatpush1.bf16.msra.mxu0 0
        %940 = vmatprep.mubr.bf16.mxu0 0
        %941 = vmatmul.mubr.bf16.gmra.mrb[0].mxu0 %v903
        %v942 = vpop.f32.mrb[0].mxu0
        %v943 = vadd.f32 0.0, %v942
        %v944 = vpop.f32.mrb[0].mxu0
        %v945 = vpop.f32.mrb[0].mxu0
        %v946 = vpop.f32.mrb[0].mxu0
        %947 = vdwg.mxu0
        %v948 = vadd.f32 %v785, %v943
        %949 = vrot.lane.b32.xlu0 %v472, 104
        %v950 = vpop.permute.xlu0 %949
        %951 = vrot.lane.b32.xlu0 %v472, 72
        %v952 = vpop.permute.xlu0 %951
        %v954 = vsel %vm476, %v950, 0
        %v957 = vsel %vm476, %v952, 0
        %959 = vmatprep.subr.bf16.mxu0 0
        %960 = vmatpush1.bf16.xpose.msra.mxu0 %v957
        %961 = vmatprep.subr.bf16.mxu0 0
        %962 = vmatpush1.bf16.xpose.msra.mxu0 0
        %963 = vmatprep.subr.bf16.mxu0 0
        %964 = vmatpush1.bf16.xpose.msra.mxu0 0
        %965 = vmatprep.subr.bf16.mxu0 0
        %966 = vmatpush1.bf16.xpose.msra.mxu0 0
        %967 = vmatprep.subr.bf16.mxu0 0
        %968 = vmatpush1.bf16.xpose.msra.mxu0 0
        %969 = vmatprep.subr.bf16.mxu0 0
        %970 = vmatpush1.bf16.xpose.msra.mxu0 0
        %971 = vmatprep.subr.bf16.mxu0 0
        %972 = vmatpush1.bf16.xpose.msra.mxu0 0
        %973 = vmatprep.subr.bf16.mxu0 0
        %974 = vmatpush1.bf16.xpose.msra.mxu0 0
        %975 = vmatprep.subr.bf16.mxu0 0
        %976 = vmatpush1.bf16.xpose.msra.mxu0 0
        %977 = vmatprep.subr.bf16.mxu0 0
        %978 = vmatpush1.bf16.xpose.msra.mxu0 0
        %979 = vmatprep.subr.bf16.mxu0 0
        %980 = vmatpush1.bf16.xpose.msra.mxu0 0
        %981 = vmatprep.subr.bf16.mxu0 0
        %982 = vmatpush1.bf16.xpose.msra.mxu0 0
        %983 = vmatprep.subr.bf16.mxu0 0
        %984 = vmatpush1.bf16.xpose.msra.mxu0 0
        %985 = vmatprep.subr.bf16.mxu0 0
        %986 = vmatpush1.bf16.xpose.msra.mxu0 0
        %987 = vmatprep.subr.bf16.mxu0 0
        %988 = vmatpush1.bf16.xpose.msra.mxu0 0
        %989 = vmatprep.subr.bf16.mxu0 0
        %990 = vmatpush1.bf16.xpose.msra.mxu0 0
        %991 = vmatprep.mubr.bf16.mxu0 0
        %992 = vmatmul.mubr.bf16.gmra.mrb[0].mxu0 %v954
        %v993 = vpop.f32.mrb[0].mxu0
        %v994 = vadd.f32 0.0, %v993
        %v995 = vpop.f32.mrb[0].mxu0
        %v996 = vpop.f32.mrb[0].mxu0
        %v997 = vpop.f32.mrb[0].mxu0
        %998 = vdwg.mxu0
        %v999 = vsel %vm476, %v994, -inf
        %1000 = vmax.xlane.f32.xlu0 %v999
        %v1001 = vpop.xlane.xlu0 %1000
        %v1002 = vsub.f32 %v994, %v1001
        %v1003 = vmul.f32 %v1002, 1.442695
        %v1004 = vpow.pop %v1003
        %v1005 = vsel %vm476, %v1004, 0.0
        %1006 = vadd.xlane.f32.xlu0 %v1005
        %v1007 = vpop.xlane.xlu0 %1006
        %v1008 = vrcp.pop %v1007
        %v1009 = vmul.f32 %v1004, %v1008
        %v1010 = vpack.c.bf16 %v1009, %v1009
        %1011 = vrot.lane.b32.xlu0 %v472, 40
        %v1012 = vpop.permute.xlu0 %1011
        %v1014 = vsel %vm476, %v1010, 0
        %v1017 = vsel %vm540, %v1012, 0
        %1019 = vmatprep.subr.bf16.mxu0 0
        %1020 = vmatpush1.bf16.msra.mxu0 %v1017
        %1021 = vmatprep.subr.bf16.mxu0 0
        %1022 = vmatpush1.bf16.msra.mxu0 0
        %1023 = vmatprep.subr.bf16.mxu0 0
        %1024 = vmatpush1.bf16.msra.mxu0 0
        %1025 = vmatprep.subr.bf16.mxu0 0
        %1026 = vmatpush1.bf16.msra.mxu0 0
        %1027 = vmatprep.subr.bf16.mxu0 0
        %1028 = vmatpush1.bf16.msra.mxu0 0
        %1029 = vmatprep.subr.bf16.mxu0 0
        %1030 = vmatpush1.bf16.msra.mxu0 0
        %1031 = vmatprep.subr.bf16.mxu0 0
        %1032 = vmatpush1.bf16.msra.mxu0 0
        %1033 = vmatprep.subr.bf16.mxu0 0
        %1034 = vmatpush1.bf16.msra.mxu0 0
        %1035 = vmatprep.subr.bf16.mxu0 0
        %1036 = vmatpush1.bf16.msra.mxu0 0
        %1037 = vmatprep.subr.bf16.mxu0 0
        %1038 = vmatpush1.bf16.msra.mxu0 0
        %1039 = vmatprep.subr.bf16.mxu0 0
        %1040 = vmatpush1.bf16.msra.mxu0 0
        %1041 = vmatprep.subr.bf16.mxu0 0
        %1042 = vmatpush1.bf16.msra.mxu0 0
        %1043 = vmatprep.subr.bf16.mxu0 0
        %1044 = vmatpush1.bf16.msra.mxu0 0
        %1045 = vmatprep.subr.bf16.mxu0 0
        %1046 = vmatpush1.bf16.msra.mxu0 0
        %1047 = vmatprep.subr.bf16.mxu0 0
        %1048 = vmatpush1.bf16.msra.mxu0 0
        %1049 = vmatprep.subr.bf16.mxu0 0
        %1050 = vmatpush1.bf16.msra.mxu0 0
        %1051 = vmatprep.mubr.bf16.mxu0 0
        %1052 = vmatmul.mubr.bf16.gmra.mrb[0].mxu0 %v1014
        %v1053 = vpop.f32.mrb[0].mxu0
        %v1054 = vadd.f32 0.0, %v1053
        %v1055 = vpop.f32.mrb[0].mxu0
        %v1056 = vpop.f32.mrb[0].mxu0
        %v1057 = vpop.f32.mrb[0].mxu0
        %1058 = vdwg.mxu0
        %v1059 = vpack.c.bf16 %v1054, %v1054
        %v1060 = vld [vmem:[%s2 + $0xc] sm:$0xf]
        %v1062 = vsel %vm476, %v1059, 0
        %v1065 = vsel %vm540, %v1060, 0
        %1067 = vmatprep.subr.bf16.mxu0 0
        %1068 = vmatpush1.bf16.msra.mxu0 %v1065
        %1069 = vmatprep.subr.bf16.mxu0 0
        %1070 = vmatpush1.bf16.msra.mxu0 0
        %1071 = vmatprep.subr.bf16.mxu0 0
        %1072 = vmatpush1.bf16.msra.mxu0 0
        %1073 = vmatprep.subr.bf16.mxu0 0
        %1074 = vmatpush1.bf16.msra.mxu0 0
        %1075 = vmatprep.subr.bf16.mxu0 0
        %1076 = vmatpush1.bf16.msra.mxu0 0
        %1077 = vmatprep.subr.bf16.mxu0 0
        %1078 = vmatpush1.bf16.msra.mxu0 0
        %1079 = vmatprep.subr.bf16.mxu0 0
        %1080 = vmatpush1.bf16.msra.mxu0 0
        %1081 = vmatprep.subr.bf16.mxu0 0
        %1082 = vmatpush1.bf16.msra.mxu0 0
        %1083 = vmatprep.subr.bf16.mxu0 0
        %1084 = vmatpush1.bf16.msra.mxu0 0
        %1085 = vmatprep.subr.bf16.mxu0 0
        %1086 = vmatpush1.bf16.msra.mxu0 0
        %1087 = vmatprep.subr.bf16.mxu0 0
        %1088 = vmatpush1.bf16.msra.mxu0 0
        %1089 = vmatprep.subr.bf16.mxu0 0
        %1090 = vmatpush1.bf16.msra.mxu0 0
        %1091 = vmatprep.subr.bf16.mxu0 0
        %1092 = vmatpush1.bf16.msra.mxu0 0
        %1093 = vmatprep.subr.bf16.mxu0 0
        %1094 = vmatpush1.bf16.msra.mxu0 0
        %1095 = vmatprep.subr.bf16.mxu0 0
        %1096 = vmatpush1.bf16.msra.mxu0 0
        %1097 = vmatprep.subr.bf16.mxu0 0
        %1098 = vmatpush1.bf16.msra.mxu0 0
        %1099 = vmatprep.mubr.bf16.mxu0 0
        %1100 = vmatmul.mubr.bf16.gmra.mrb[0].mxu0 %v1062
        %v1101 = vpop.f32.mrb[0].mxu0
        %v1102 = vadd.f32 0.0, %v1101
        %v1103 = vpop.f32.mrb[0].mxu0
        %v1104 = vpop.f32.mrb[0].mxu0
        %v1105 = vpop.f32.mrb[0].mxu0
        %1106 = vdwg.mxu0
        %v1107 = vadd.f32 %v948, %v1102
        %v1108 = vld [vmem:[%s3] sm:$0x1]
        %v1110 = vlaneseq
        %v1111 = vshrl.u32 %v1110, 7
        %v1112 = vsub.s32 0, %v1111
        %v1113 = vrot.slane %v1108, %v1112
        %v1115 = vadd.f32 %v1107, %v1113
        %v1116 = vld [vmem:[%s4] sm:$0x1]
        %v1117 = vld [vmem:[%s5] sm:$0x1]
        %v1118 = vsel %vm428, %v1115, 0.0
        %1119 = vadd.xlane.f32.xlu0 %v1118
        %v1120 = vpop.xlane.xlu0 %1119
        %v1121 = vrcp.pop 32.0
        %v1122 = vmul.f32 %v1120, %v1121
        %v1123 = vmul.f32 %v1115, %v1115
        %v1124 = vsel %vm428, %v1123, 0.0
        %1125 = vadd.xlane.f32.xlu0 %v1124
        %v1126 = vpop.xlane.xlu0 %1125
        %v1127 = vmul.f32 %v1126, %v1121
        %v1128 = vmul.f32 %v1122, %v1122
        %v1129 = vsub.f32 %v1127, %v1128
        %v1130 = vsub.f32 %v1115, %v1122
        %v1131 = vadd.f32 %v1129, 1e-05
        %v1132 = vrsqrt.pop %v1131
        %v1133 = vmul.f32 %v1130, %v1132
        %v1135 = vlaneseq
        %v1136 = vshrl.u32 %v1135, 7
        %v1137 = vsub.s32 0, %v1136
        %v1138 = vrot.slane %v1116, %v1137
        %v1140 = vmul.f32 %v1133, %v1138
        %v1142 = vlaneseq
        %v1143 = vshrl.u32 %v1142, 7
        %v1144 = vsub.s32 0, %v1143
        %v1145 = vrot.slane %v1117, %v1144
        %v1147 = vadd.f32 %v1140, %v1145
        %v1148 = vadd.f32 %v410, %v1147
        %v1149 = vpack.c.bf16 %v1148, %v1148
        %v1150 = vld [vmem:[%s6] sm:$0xf]
        %v1151 = vld [vmem:[%s6 + $0x4] sm:$0xf]
        %v1152 = vld [vmem:[%s6 + $0x8] sm:$0xf]
        %v1153 = vld [vmem:[%s6 + $0xc] sm:$0xf]
        %v1154 = vld [vmem:[%s7] sm:$0x1]
        %v1156 = vlaneseq
        %v1157 = vshrl.u32 %v1156, 7
        %v1158 = vsub.s32 0, %v1157
        %v1159 = vrot.slane %v1154, %v1158
        %v1165 = vunpack.c.l.b16 %v1150
        %v1166 = vunpack.c.l.b16 %v1151
        %v1167 = vunpack.c.l.b16 %v1152
        %v1168 = vunpack.c.l.b16 %v1153
        %v1169 = vpack.c.b16 %v1166, %v1165
        %v1170 = vpack.c.b16 %v1168, %v1167
        %v1174 = vsel %vm428, %v1149, 0
        %1176 = vmatprep.subr.bf16.mxu0 0
        %1177 = vmatpush1.bf16.msra.mxu0 %v1169
        %1178 = vmatprep.subr.bf16.mxu0 0
        %1179 = vmatpush1.bf16.msra.mxu0 %v1170
        %1180 = vmatprep.subr.bf16.mxu0 0
        %1181 = vmatpush1.bf16.msra.mxu0 0
        %1182 = vmatprep.subr.bf16.mxu0 0
        %1183 = vmatpush1.bf16.msra.mxu0 0
        %1184 = vmatprep.subr.bf16.mxu0 0
        %1185 = vmatpush1.bf16.msra.mxu0 0
        %1186 = vmatprep.subr.bf16.mxu0 0
        %1187 = vmatpush1.bf16.msra.mxu0 0
        %1188 = vmatprep.subr.bf16.mxu0 0
        %1189 = vmatpush1.bf16.msra.mxu0 0
        %1190 = vmatprep.subr.bf16.mxu0 0
        %1191 = vmatpush1.bf16.msra.mxu0 0
        %1192 = vmatprep.subr.bf16.mxu0 0
        %1193 = vmatpush1.bf16.msra.mxu0 0
        %1194 = vmatprep.subr.bf16.mxu0 0
        %1195 = vmatpush1.bf16.msra.mxu0 0
        %1196 = vmatprep.subr.bf16.mxu0 0
        %1197 = vmatpush1.bf16.msra.mxu0 0
        %1198 = vmatprep.subr.bf16.mxu0 0
        %1199 = vmatpush1.bf16.msra.mxu0 0
        %1200 = vmatprep.subr.bf16.mxu0 0
        %1201 = vmatpush1.bf16.msra.mxu0 0
        %1202 = vmatprep.subr.bf16.mxu0 0
        %1203 = vmatpush1.bf16.msra.mxu0 0
        %1204 = vmatprep.subr.bf16.mxu0 0
        %1205 = vmatpush1.bf16.msra.mxu0 0
        %1206 = vmatprep.subr.bf16.mxu0 0
        %1207 = vmatpush1.bf16.msra.mxu0 0
        %1208 = vmatprep.mubr.bf16.mxu0 0
        %1209 = vmatmul.mubr.bf16.gmra.mrb[0].mxu0 %v1174
        %v1210 = vpop.f32.mrb[0].mxu0
        %v1211 = vadd.f32 %v1159, %v1210
        %v1212 = vpop.f32.mrb[0].mxu0
        %v1213 = vpop.f32.mrb[0].mxu0
        %v1214 = vpop.f32.mrb[0].mxu0
        %1215 = vdwg.mxu0
        %v1216 = vmul.f32 %v1211, 0.5
        %v1217 = vmul.f32 %v1211, 0.70710677
        %v1218 = verf.f32.pop %v1217
        %v1219 = vadd.f32 %v1218, 1.0
        %v1220 = vmul.f32 %v1216, %v1219
        %v1221 = vpack.c.bf16 %v1220, %v1220
        %v1222 = vld [vmem:[%s8] sm:$0xf]
        %v1223 = vld [vmem:[%s8 + $0x4] sm:$0xf]
        %v1224 = vld [vmem:[%s8 + $0x8] sm:$0xf]
        %v1225 = vld [vmem:[%s8 + $0xc] sm:$0xf]
        %v1226 = vld [vmem:[%s8 + $0x10] sm:$0xf]
        %v1227 = vld [vmem:[%s8 + $0x14] sm:$0xf]
        %v1228 = vld [vmem:[%s8 + $0x18] sm:$0xf]
        %v1229 = vld [vmem:[%s8 + $0x1c] sm:$0xf]
        %v1230 = vld [vmem:[%s8 + $0x20] sm:$0xf]
        %v1231 = vld [vmem:[%s8 + $0x24] sm:$0xf]
        %v1232 = vld [vmem:[%s8 + $0x28] sm:$0xf]
        %v1233 = vld [vmem:[%s8 + $0x2c] sm:$0xf]
        %v1234 = vld [vmem:[%s8 + $0x30] sm:$0xf]
        %v1235 = vld [vmem:[%s8 + $0x34] sm:$0xf]
        %v1236 = vld [vmem:[%s8 + $0x38] sm:$0xf]
        %v1237 = vld [vmem:[%s8 + $0x3c] sm:$0xf]
        %v1238 = vld [vmem:[%s9] sm:$0x1]
        %v1240 = vlaneseq
        %v1241 = vshrl.u32 %v1240, 7
        %v1242 = vsub.s32 0, %v1241
        %v1243 = vrot.slane %v1238, %v1242
        %v1261 = vunpack.c.l.b16 %v1222
        %v1262 = vunpack.c.l.b16 %v1223
        %v1263 = vunpack.c.l.b16 %v1224
        %v1264 = vunpack.c.l.b16 %v1225
        %v1265 = vunpack.c.l.b16 %v1226
        %v1266 = vunpack.c.l.b16 %v1227
        %v1267 = vunpack.c.l.b16 %v1228
        %v1268 = vunpack.c.l.b16 %v1229
        %v1269 = vunpack.c.l.b16 %v1230
        %v1270 = vunpack.c.l.b16 %v1231
        %v1271 = vunpack.c.l.b16 %v1232
        %v1272 = vunpack.c.l.b16 %v1233
        %v1273 = vunpack.c.l.b16 %v1234
        %v1274 = vunpack.c.l.b16 %v1235
        %v1275 = vunpack.c.l.b16 %v1236
        %v1276 = vunpack.c.l.b16 %v1237
        %v1277 = vpack.c.b16 %v1262, %v1261
        %v1278 = vpack.c.b16 %v1264, %v1263
        %v1279 = vpack.c.b16 %v1266, %v1265
        %v1280 = vpack.c.b16 %v1268, %v1267
        %v1281 = vpack.c.b16 %v1270, %v1269
        %v1282 = vpack.c.b16 %v1272, %v1271
        %v1283 = vpack.c.b16 %v1274, %v1273
        %v1284 = vpack.c.b16 %v1276, %v1275
        %1293 = vmatprep.subr.bf16.mxu0 0
        %1294 = vmatpush1.bf16.msra.mxu0 %v1277
        %1295 = vmatprep.subr.bf16.mxu0 0
        %1296 = vmatpush1.bf16.msra.mxu0 %v1278
        %1297 = vmatprep.subr.bf16.mxu0 0
        %1298 = vmatpush1.bf16.msra.mxu0 %v1279
        %1299 = vmatprep.subr.bf16.mxu0 0
        %1300 = vmatpush1.bf16.msra.mxu0 %v1280
        %1301 = vmatprep.subr.bf16.mxu0 0
        %1302 = vmatpush1.bf16.msra.mxu0 %v1281
        %1303 = vmatprep.subr.bf16.mxu0 0
        %1304 = vmatpush1.bf16.msra.mxu0 %v1282
        %1305 = vmatprep.subr.bf16.mxu0 0
        %1306 = vmatpush1.bf16.msra.mxu0 %v1283
        %1307 = vmatprep.subr.bf16.mxu0 0
        %1308 = vmatpush1.bf16.msra.mxu0 %v1284
        %1309 = vmatprep.subr.bf16.mxu0 0
        %1310 = vmatpush1.bf16.msra.mxu0 0
        %1311 = vmatprep.subr.bf16.mxu0 0
        %1312 = vmatpush1.bf16.msra.mxu0 0
        %1313 = vmatprep.subr.bf16.mxu0 0
        %1314 = vmatpush1.bf16.msra.mxu0 0
        %1315 = vmatprep.subr.bf16.mxu0 0
        %1316 = vmatpush1.bf16.msra.mxu0 0
        %1317 = vmatprep.subr.bf16.mxu0 0
        %1318 = vmatpush1.bf16.msra.mxu0 0
        %1319 = vmatprep.subr.bf16.mxu0 0
        %1320 = vmatpush1.bf16.msra.mxu0 0
        %1321 = vmatprep.subr.bf16.mxu0 0
        %1322 = vmatpush1.bf16.msra.mxu0 0
        %1323 = vmatprep.subr.bf16.mxu0 0
        %1324 = vmatpush1.bf16.msra.mxu0 0
        %1325 = vmatprep.mubr.bf16.mxu0 0
        %1326 = vmatmul.mubr.bf16.gmra.mrb[0].mxu0 %v1221
        %v1327 = vpop.f32.mrb[0].mxu0
        %v1328 = vadd.f32 %v1243, %v1327
        %v1329 = vpop.f32.mrb[0].mxu0
        %v1330 = vpop.f32.mrb[0].mxu0
        %v1331 = vpop.f32.mrb[0].mxu0
        %1332 = vdwg.mxu0
        %v1333 = vld [vmem:[%s10] sm:$0x1]
        %v1334 = vld [vmem:[%s11] sm:$0x1]
        %v1335 = vsel %vm428, %v1328, 0.0
        %1336 = vadd.xlane.f32.xlu0 %v1335
        %v1337 = vpop.xlane.xlu0 %1336
        %v1338 = vmul.f32 %v1337, %v1121
        %v1339 = vmul.f32 %v1328, %v1328
        %v1340 = vsel %vm428, %v1339, 0.0
        %1341 = vadd.xlane.f32.xlu0 %v1340
        %v1342 = vpop.xlane.xlu0 %1341
        %v1343 = vmul.f32 %v1342, %v1121
        %v1344 = vmul.f32 %v1338, %v1338
        %v1345 = vsub.f32 %v1343, %v1344
        %v1346 = vsub.f32 %v1328, %v1338
        %v1347 = vadd.f32 %v1345, 1e-05
        %v1348 = vrsqrt.pop %v1347
        %v1349 = vmul.f32 %v1346, %v1348
        %v1351 = vlaneseq
        %v1352 = vshrl.u32 %v1351, 7
        %v1353 = vsub.s32 0, %v1352
        %v1354 = vrot.slane %v1333, %v1353
        %v1356 = vmul.f32 %v1349, %v1354
        %v1358 = vlaneseq
        %v1359 = vshrl.u32 %v1358, 7
        %v1360 = vsub.s32 0, %v1359
        %v1361 = vrot.slane %v1334, %v1360
        %v1363 = vadd.f32 %v1356, %v1361
        %v1364 = vadd.f32 %v1148, %v1363
        %1365 = vst.msk [vmem:[%s404] sm:$0xff] %vm428, %v1364
        %s1366 = sand.u32 %s291, 1
        %s1367 = scalar_lea.sflag [#allocation3], %s1366
        %s1368 = sand.u32 %s291, 1
        %s1369 = smul.addr %s1368, 8
        %s1370 = scalar_lea.vmem [#allocation2], %s1369
        // Predicated region
        $region69: #{tpu_custom_call.1} parent=67 // pred_check
          %p1371 = pneg %p301
        $region70: #{tpu_custom_call.1} parent=67 // pred_check_branch
          %1373 = sbr.rel (%p1371) target = $region72
        $region71: #{tpu_custom_call.1} parent=67 // pred_region
          %s1375 = ssub.s32 128, 128
          %1376 = vsyncadd %s1367, %s1375
          %s1377 = smul.addr %s26, 128
          %s1378 = scalar_lea.hbm %s12, %s1377
          %s1380 = sshll.u32 %s1370, 4
          %s1381 = int_to_ptr.vmem [resolvable:$true] %s1380
          %1383 = dma.vmem_to_hbm [thread:$0]  %s1381, 128, %s1378, %s1367
        $region72: #{tpu_custom_call.1} parent=67 // pred_fallthru
          _
      $region68: #{tpu_custom_call.1} parent=5 // pred_fallthru
        _
      %p1384 = scmp.le.s32.totalorder 2, %s21
      // Predicated region
      $region73: #{tpu_custom_call.1} parent=5 // pred_check
        %p1385 = pneg %p1384
      $region74: #{tpu_custom_call.1} parent=5 // pred_check_branch
        %1387 = sbr.rel (%p1385) target = $region76
      $region75: #{tpu_custom_call.1} parent=5 // pred_region
        %s1388 = ssub.s32 %s21, 2
        // Predicated region
        $region77: #{tpu_custom_call.1} parent=75 // pred_check
          %p1389 = pneg %p307
        $region78: #{tpu_custom_call.1} parent=75 // pred_check_branch
          %1391 = sbr.rel (%p1389) target = $region80
        $region79: #{tpu_custom_call.1} parent=75 // pred_region
          %s1392 = sand.u32 %s292, 1
          %s1393 = scalar_lea.sflag [#allocation3], %s1392
          %s1394 = sand.u32 %s292, 1
          %s1395 = smul.addr %s1394, 8
          %s1396 = scalar_lea.vmem [#allocation2], %s1395
          %1397 = dma.done %s1393, 128
        $region80: #{tpu_custom_call.1} parent=75 // pred_fallthru
          _
      $region76: #{tpu_custom_call.1} parent=5 // pred_fallthru
        _
    $region6: #{tpu_custom_call.1} parent=1 // loop_footer
      %s25 = sadd.s32 1, %s21
    $region7: #{tpu_custom_call.1} parent=1 // loop_footer_branch
      %20 = sbr.rel target = $region3
    $region8: #{tpu_custom_call.1} parent=1 // loop_exit
      _
    %1398 = vsyncpa [#allocation3], 1
    %s1399 = scalar_lea.sflag [#allocation3], 1
    %1400 = vsyncpa %s1399, 1

</llo_original>
